<compile_context>
chip_gen: v7x
topology: tpu7x:2x2x1
jax: 0.10.0
libtpu: 0.0.40
codegen_flags: <defaults>
</compile_context>

<pallas_src>
import numpy as np
import jax
import jax.numpy as jnp
from jax.experimental import pallas as pl
from jax.experimental.pallas import tpu as pltpu


def gnnsage_kernel(At_ref, Xt_ref, base_ref, mask_ref, w_ref,
                   cvec_ref, scal_ref, out_ref):
    tb = At_ref.shape[0]
    goff = pl.program_id(0) * tb
    bl = scal_ref[0]       # SAGEConv lin_l bias
    w2_out = scal_ref[1]   # fc2 weight on the gnn-output feature
    base = base_ref[...]   # (1, Np) f32: x_dist * w2_dist; padded lanes = -1e30
    W = w_ref[...]         # (2, L) bf16: row 0 = lin_l weight, row 1 = lin_r weight

    def body(g, carry):
        Xt = Xt_ref[g]     # (L, Np) bf16  node features transposed (lane = node)
        At = At_ref[g]     # (Np, Np) bf16 A^T, with A[i, j] = count(j->i)/in_deg(i)

        # Reassociated SAGEConv(mean): (wl @ Xt) @ At + wr @ Xt + bl
        y = jnp.dot(W, Xt, preferred_element_type=jnp.float32)            # (2, Np)
        agg = jnp.dot(y[0:1].astype(jnp.bfloat16), At,
                      preferred_element_type=jnp.float32)                 # (1, Np)
        gnn = agg + y[1:2] + bl                                           # (1, Np)

        # fc2 decomposed: per-node score = gnn*w_out + dist*w_dist + <ctx, w_ctx> + b2
        c = cvec_ref[goff + g]                     # hoisted per-graph context scalar
        score = gnn * w2_out + base + c                                   # (1, Np)

        # LogSoftmax over nodes (padded lanes carry -1e30 -> exp underflows to 0)
        m = jnp.max(score, axis=-1, keepdims=True)
        lse = jnp.log(jnp.sum(jnp.exp(score - m), axis=-1, keepdims=True)) + m
        logsm = score - lse

        # masked_fill(x_mask.bool(), -1e8)
        out_ref[pl.ds(g, 1), :] = jnp.where(mask_ref[pl.ds(g, 1), :] > 0.0,
                                            jnp.float32(-1e8), logsm)
        return carry

    jax.lax.fori_loop(0, tb, body, 0, unroll=True)


def build_mean_adjacency(stops, nnodes):
    """Dense mean-aggregation adjacency per trajectory (mirrors create_edge_index +
    PyG SAGEConv mean aggregation): A[b, i, j] = #edges(j->i) / in_deg(i)."""
    B = len(stops)
    A = np.zeros((B, nnodes, nnodes), np.float32)
    for b, traj in enumerate(stops):
        for i in range(len(traj) - 1):
            A[b, traj[i + 1], traj[i]] += 1.0
    deg = A.sum(axis=2, keepdims=True)
    return np.where(deg > 0, A / np.maximum(deg, 1.0), 0.0).astype(np.float32)


def gnnsage_forward(stops, x, x_dist, x_features, x_week, x_mask, params, *, tb=8):
    """GNNSAGE.forward (default path: weekly=False, onehot=False, decision_focused=False)."""
    emb_w, stop_emb_w, fc2_w, fc2_b, sage_wl, sage_bl, sage_wr = params
    B, L, N = x.shape
    E = emb_w.shape[1]
    S = stop_emb_w.shape[1]
    F = x_features.shape[1]
    Dc = E + F + S

    # ---- host-side glue (graph construction + embedding gathers) ----
    A = build_mean_adjacency(stops, N)                                  # (B, N, N)
    x_embed = jnp.stack([stop_emb_w[jnp.asarray(t)].sum(0) for t in stops])   # (B, S)
    x_emb = emb_w[x_week]                                               # (B, E)
    ctx = jnp.concatenate([x_emb, x_features, x_embed], axis=1)         # (B, Dc)

    w2_ctx = fc2_w[0, :Dc]
    w2_out = fc2_w[0, Dc]
    w2_dist = fc2_w[0, Dc + 1]
    cvec = ctx @ w2_ctx + fc2_b[0]                                      # (B,) hoisted

    # ---- padding: lane-dense node axis, sublane-dense batch blocks, >=2 grid steps ----
    Np = ((N + 127) // 128) * 128
    Bp = max(2 * tb, ((B + tb - 1) // tb) * tb)

    At_p = np.zeros((Bp, Np, Np), np.float32)
    At_p[:B, :N, :N] = np.transpose(A, (0, 2, 1))                       # A^T per graph
    Xt_p = np.zeros((Bp, L, Np), np.float32)
    Xt_p[:B, :, :N] = np.asarray(x, np.float32)
    mask_p = np.ones((Bp, Np), np.float32)
    mask_p[:B, :N] = np.asarray(x_mask, np.float32)
    base = np.full((1, Np), -1e30, np.float32)         # padded lanes excluded from softmax
    base[0, :N] = np.asarray(x_dist, np.float32) * float(w2_dist)
    cvec_p = np.zeros((Bp,), np.float32)
    cvec_p[:B] = np.asarray(cvec, np.float32)

    At_b = jnp.asarray(At_p, jnp.bfloat16)
    Xt_b = jnp.asarray(Xt_p, jnp.bfloat16)
    W = jnp.asarray(jnp.stack([sage_wl[0], sage_wr[0]]), jnp.bfloat16)  # (2, L)
    scal = jnp.array([sage_bl[0], w2_out], jnp.float32)                 # SMEM scalars

    # Per-grid-step VMEM: (tb*Np*Np + tb*L*Np)*2B bf16 + small f32 tiles, double-
    # buffered -> well under the scoped-VMEM default on v5e/v6e/v7x; no override needed.
    out = pl.pallas_call(
        gnnsage_kernel,
        out_shape=jax.ShapeDtypeStruct((Bp, Np), jnp.float32),
        grid_spec=pltpu.PrefetchScalarGridSpec(
            num_scalar_prefetch=0,
            grid=(Bp // tb,),
            in_specs=[
                pl.BlockSpec((tb, Np, Np), lambda i: (i, 0, 0)),     # A^T      (bf16)
                pl.BlockSpec((tb, L, Np), lambda i: (i, 0, 0)),      # X^T      (bf16)
                pl.BlockSpec((1, Np), lambda i: (0, 0)),             # base     (shared)
                pl.BlockSpec((tb, Np), lambda i: (i, 0)),            # mask
                pl.BlockSpec((2, L), lambda i: (0, 0)),              # [wl; wr] (bf16)
                pl.BlockSpec(memory_space=pltpu.MemorySpace.SMEM),   # cvec (Bp,)
                pl.BlockSpec(memory_space=pltpu.MemorySpace.SMEM),   # [bl, w2_out]
            ],
            out_specs=pl.BlockSpec((tb, Np), lambda i: (i, 0)),
        ),
        compiler_params=pltpu.CompilerParams(dimension_semantics=("parallel",)),
    )(At_b, Xt_b, jnp.asarray(base), jnp.asarray(mask_p), W,
      jnp.asarray(cvec_p), scal)
    return out[:B, :N]


if __name__ == "__main__":
    # Small shapes consistent with the module (scaled-down defaults)
    B = 2    # n_rows (batch)
    N = 16   # nnodes
    L = 8    # lookback_period
    E = 4    # embedding_size
    S = 12   # stop_embedding_size
    F = 2    # n_features
    NW = 7   # nweekdays
    Dc = E + F + S
    Dtot = Dc + 2   # fc2 in_features

    key = jax.random.PRNGKey(0)
    ks = jax.random.split(key, 10)

    # ---- parameters (module __init__ shapes; fc1/Dropout are unused in forward) ----
    emb_w = jax.random.normal(ks[0], (NW, E), jnp.float32) * 0.1      # nn.Embedding(nweekdays, E)
    stop_emb_w = jax.random.normal(ks[1], (N, S), jnp.float32) * 0.1  # nn.Embedding(nnodes, S)
    fc2_w = jax.random.normal(ks[2], (1, Dtot), jnp.float32) * 0.1    # nn.Linear(Dtot, 1)
    fc2_b = jax.random.normal(ks[3], (1,), jnp.float32) * 0.1
    sage_wl = jax.random.normal(ks[4], (1, L), jnp.float32) * 0.1     # SAGEConv lin_l (neighbor)
    sage_bl = jax.random.normal(ks[5], (1,), jnp.float32) * 0.1
    sage_wr = jax.random.normal(ks[6], (1, L), jnp.float32) * 0.1     # SAGEConv lin_r (root)

    # ---- inputs ----
    x = jax.random.normal(ks[7], (B, L, N), jnp.float32)    # (n_rows, lookback, nnodes)
    x_dist = jax.random.uniform(ks[8], (N,), jnp.float32)   # (nnodes,)
    x_features = jax.random.normal(ks[9], (B, F), jnp.float32)
    x_week = jnp.array([1, 4], dtype=jnp.int32)
    mask_np = np.zeros((B, N), dtype=np.float32)
    mask_np[0, :3] = 1.0
    mask_np[1, 5:8] = 1.0
    x_mask = jnp.asarray(mask_np)
    stops = [[0, 3, 5, 2, 7, 1], [1, 4, 6, 2, 0, 9, 11]]    # per-row trajectories

    params = (emb_w, stop_emb_w, fc2_w, fc2_b, sage_wl, sage_bl, sage_wr)
    out = gnnsage_forward(stops, x, x_dist, x_features, x_week, x_mask, params)
    out = jax.block_until_ready(out)

    # ---- numpy reference following the PyTorch forward, using the same bf16-
    #      quantized operands the kernel streams (A^T, X^T, SAGE weights) ----
    def q(a):
        return np.asarray(jnp.asarray(a, jnp.bfloat16).astype(jnp.float32))

    A = build_mean_adjacency(stops, N)
    A_q, X_q = q(A), q(x)
    wl_q, wr_q = q(sage_wl), q(sage_wr)
    X_np = np.transpose(X_q, (0, 2, 1))                          # (B, N, L) like batch.x
    agg = np.einsum('bij,bjl->bil', A_q, X_np)                   # mean neighbor features
    gnn = agg @ wl_q.T + np.asarray(sage_bl) + X_np @ wr_q.T     # (B, N, 1)
    x_embed = np.stack([np.asarray(stop_emb_w)[np.asarray(t)].sum(0) for t in stops])
    x_emb = np.asarray(emb_w)[np.asarray(x_week)]
    ctx = np.concatenate([x_emb, np.asarray(x_features), x_embed], axis=1)
    feat = np.concatenate([
        np.broadcast_to(ctx[:, None, :], (B, N, Dc)),
        gnn,
        np.broadcast_to(np.asarray(x_dist)[None, :, None], (B, N, 1))], axis=-1)
    scores = (feat @ np.asarray(fc2_w).T + np.asarray(fc2_b))[..., 0]   # (B, N)
    m = scores.max(axis=1, keepdims=True)
    logsm = scores - (np.log(np.exp(scores - m).sum(axis=1, keepdims=True)) + m)
    ref = np.where(mask_np > 0, -1e8, logsm)

    assert out.shape == (B, N)
    np.testing.assert_allclose(np.asarray(out), ref, rtol=2e-3, atol=2e-3)
    print("KERNEL_OK")
</pallas_src>

<mosaic_0001>
module attributes {stable_mosaic.version = 11 : i64} {
  func.func @gnnsage_kernel(%arg0: i32, %arg1: memref<8x128x128xbf16, #tpu.memory_space<vmem>>, %arg2: memref<8x8x128xbf16, #tpu.memory_space<vmem>>, %arg3: memref<1x128xf32, #tpu.memory_space<vmem>>, %arg4: memref<8x128xf32, #tpu.memory_space<vmem>>, %arg5: memref<2x8xbf16, #tpu.memory_space<vmem>>, %arg6: memref<16xf32, #tpu.memory_space<smem>>, %arg7: memref<2xf32, #tpu.memory_space<smem>>, %arg8: memref<8x128xf32, #tpu.memory_space<vmem>>) attributes {dimension_semantics = [#tpu.dimension_semantics<parallel>], iteration_bounds = array<i64: 2>, scalar_prefetch = 0 : i64, scratch_operands = 0 : i64, tpu.core_type = #tpu.core_type<tc>, window_params = [{transform_indices = @transform_0, window_bounds = array<i64: 8, 128, 128>}, {transform_indices = @transform_1, window_bounds = array<i64: 8, 8, 128>}, {pipeline_mode = #tpu.pipeline_mode<synchronous>, transform_indices = @transform_2, window_bounds = array<i64: 1, 128>}, {transform_indices = @transform_3, window_bounds = array<i64: 8, 128>}, {pipeline_mode = #tpu.pipeline_mode<synchronous>, transform_indices = @transform_4, window_bounds = array<i64: 2, 8>}, {transform_indices = @transform_5, window_bounds = array<i64: 16>}, {transform_indices = @transform_6, window_bounds = array<i64: 2>}, {transform_indices = @transform_7, window_bounds = array<i64: 8, 128>}]} {
    %c8_i32 = arith.constant 8 : i32
    %0 = arith.muli %arg0, %c8_i32 : i32
    %c0 = arith.constant 0 : index
    %1 = memref.load %arg7[%c0] : memref<2xf32, #tpu.memory_space<smem>>
    %c1 = arith.constant 1 : index
    %2 = memref.load %arg7[%c1] : memref<2xf32, #tpu.memory_space<smem>>
    %c0_0 = arith.constant 0 : index
    %c0_1 = arith.constant 0 : index
    %3 = vector.load %arg3[%c0_0, %c0_1] : memref<1x128xf32, #tpu.memory_space<vmem>>, vector<1x128xf32>
    %c0_2 = arith.constant 0 : index
    %c0_3 = arith.constant 0 : index
    %4 = vector.load %arg5[%c0_2, %c0_3] : memref<2x8xbf16, #tpu.memory_space<vmem>>, vector<2x8xbf16>
    %c0_i32 = arith.constant 0 : i32
    %5 = arith.index_cast %c0_i32 : i32 to index
    %c0_4 = arith.constant 0 : index
    %c0_5 = arith.constant 0 : index
    %6 = vector.load %arg2[%5, %c0_4, %c0_5] : memref<8x8x128xbf16, #tpu.memory_space<vmem>>, vector<1x8x128xbf16>
    %7 = vector.shape_cast %6 : vector<1x8x128xbf16> to vector<8x128xbf16>
    %8 = arith.index_cast %c0_i32 : i32 to index
    %c0_6 = arith.constant 0 : index
    %c0_7 = arith.constant 0 : index
    %9 = vector.load %arg1[%8, %c0_6, %c0_7] : memref<8x128x128xbf16, #tpu.memory_space<vmem>>, vector<1x128x128xbf16>
    %10 = vector.shape_cast %9 : vector<1x128x128xbf16> to vector<128x128xbf16>
    %cst = arith.constant dense<0.000000e+00> : vector<2x128xf32>
    %11 = tpu.matmul %4, %7, %cst {dimension_numbers = #tpu.dot_dimension_numbers<[1], [0], [0], [1], [0, 0, 1, 1], [], []>} : vector<2x8xbf16>, vector<8x128xbf16>, vector<2x128xf32> -> vector<2x128xf32>
    %12 = vector.extract_strided_slice %11 {offsets = [0, 0], sizes = [1, 128], strides = [1, 1]} : vector<2x128xf32> to vector<1x128xf32>
    %13 = arith.truncf %12 : vector<1x128xf32> to vector<1x128xbf16>
    %cst_8 = arith.constant dense<0.000000e+00> : vector<1x128xf32>
    %14 = tpu.matmul %13, %10, %cst_8 {dimension_numbers = #tpu.dot_dimension_numbers<[1], [0], [0], [1], [0, 0, 1, 1], [], []>} : vector<1x128xbf16>, vector<128x128xbf16>, vector<1x128xf32> -> vector<1x128xf32>
    %15 = vector.extract_strided_slice %11 {offsets = [1, 0], sizes = [1, 128], strides = [1, 1]} : vector<2x128xf32> to vector<1x128xf32>
    %16 = arith.addf %14, %15 : vector<1x128xf32>
    %17 = vector.broadcast %1 : f32 to vector<1x128xf32>
    %18 = arith.addf %16, %17 : vector<1x128xf32>
    %19 = arith.addi %0, %c0_i32 : i32
    %20 = arith.index_cast %19 : i32 to index
    %21 = memref.load %arg6[%20] : memref<16xf32, #tpu.memory_space<smem>>
    %22 = vector.broadcast %2 : f32 to vector<1x128xf32>
    %23 = arith.mulf %18, %22 : vector<1x128xf32>
    %24 = arith.addf %23, %3 : vector<1x128xf32>
    %25 = vector.broadcast %21 : f32 to vector<1x128xf32>
    %26 = arith.addf %24, %25 : vector<1x128xf32>
    %cst_9 = arith.constant dense<0xFF800000> : vector<1xf32>
    %27 = vector.multi_reduction <maximumf>, %26, %cst_9 [1] : vector<1x128xf32> to vector<1xf32>
    %28 = vector.shape_cast %27 : vector<1xf32> to vector<1x1xf32>
    %29 = vector.broadcast %28 : vector<1x1xf32> to vector<1x128xf32>
    %30 = arith.subf %26, %29 : vector<1x128xf32>
    %31 = math.exp %30 : vector<1x128xf32>
    %cst_10 = arith.constant dense<0.000000e+00> : vector<1xf32>
    %32 = vector.multi_reduction <add>, %31, %cst_10 [1] : vector<1x128xf32> to vector<1xf32>
    %33 = vector.shape_cast %32 : vector<1xf32> to vector<1x1xf32>
    %34 = math.log %33 : vector<1x1xf32>
    %35 = arith.addf %34, %28 : vector<1x1xf32>
    %36 = vector.broadcast %35 : vector<1x1xf32> to vector<1x128xf32>
    %37 = arith.subf %26, %36 : vector<1x128xf32>
    %38 = arith.index_cast %c0_i32 : i32 to index
    %c0_11 = arith.constant 0 : index
    %39 = vector.load %arg4[%38, %c0_11] : memref<8x128xf32, #tpu.memory_space<vmem>>, vector<1x128xf32>
    %cst_12 = arith.constant 0.000000e+00 : f32
    %40 = vector.broadcast %cst_12 : f32 to vector<1x128xf32>
    %41 = arith.cmpf ogt, %39, %40 : vector<1x128xf32>
    %cst_13 = arith.constant -1.000000e+08 : f32
    %42 = vector.broadcast %cst_13 : f32 to vector<1x128xf32>
    %43 = arith.select %41, %42, %37 : vector<1x128xi1>, vector<1x128xf32>
    %44 = arith.index_cast %c0_i32 : i32 to index
    %c0_14 = arith.constant 0 : index
    %45 = vector.load %arg8[%44, %c0_14] : memref<8x128xf32, #tpu.memory_space<vmem>>, vector<1x128xf32>
    tpu.vector_store %arg8[%44, %c0_14], %43 {strides = array<i32>} : memref<8x128xf32, #tpu.memory_space<vmem>>, vector<1x128xf32>,
    %c1_i32 = arith.constant 1 : i32
    %46 = arith.index_cast %c1_i32 : i32 to index
    %c0_15 = arith.constant 0 : index
    %c0_16 = arith.constant 0 : index
    %47 = vector.load %arg2[%46, %c0_15, %c0_16] : memref<8x8x128xbf16, #tpu.memory_space<vmem>>, vector<1x8x128xbf16>
    %48 = vector.shape_cast %47 : vector<1x8x128xbf16> to vector<8x128xbf16>
    %49 = arith.index_cast %c1_i32 : i32 to index
    %c0_17 = arith.constant 0 : index
    %c0_18 = arith.constant 0 : index
    %50 = vector.load %arg1[%49, %c0_17, %c0_18] : memref<8x128x128xbf16, #tpu.memory_space<vmem>>, vector<1x128x128xbf16>
    %51 = vector.shape_cast %50 : vector<1x128x128xbf16> to vector<128x128xbf16>
    %cst_19 = arith.constant dense<0.000000e+00> : vector<2x128xf32>
    %52 = tpu.matmul %4, %48, %cst_19 {dimension_numbers = #tpu.dot_dimension_numbers<[1], [0], [0], [1], [0, 0, 1, 1], [], []>} : vector<2x8xbf16>, vector<8x128xbf16>, vector<2x128xf32> -> vector<2x128xf32>
    %53 = vector.extract_strided_slice %52 {offsets = [0, 0], sizes = [1, 128], strides = [1, 1]} : vector<2x128xf32> to vector<1x128xf32>
    %54 = arith.truncf %53 : vector<1x128xf32> to vector<1x128xbf16>
    %cst_20 = arith.constant dense<0.000000e+00> : vector<1x128xf32>
    %55 = tpu.matmul %54, %51, %cst_20 {dimension_numbers = #tpu.dot_dimension_numbers<[1], [0], [0], [1], [0, 0, 1, 1], [], []>} : vector<1x128xbf16>, vector<128x128xbf16>, vector<1x128xf32> -> vector<1x128xf32>
    %56 = vector.extract_strided_slice %52 {offsets = [1, 0], sizes = [1, 128], strides = [1, 1]} : vector<2x128xf32> to vector<1x128xf32>
    %57 = arith.addf %55, %56 : vector<1x128xf32>
    %58 = vector.broadcast %1 : f32 to vector<1x128xf32>
    %59 = arith.addf %57, %58 : vector<1x128xf32>
    %60 = arith.addi %0, %c1_i32 : i32
    %61 = arith.index_cast %60 : i32 to index
    %62 = memref.load %arg6[%61] : memref<16xf32, #tpu.memory_space<smem>>
    %63 = vector.broadcast %2 : f32 to vector<1x128xf32>
    %64 = arith.mulf %59, %63 : vector<1x128xf32>
    %65 = arith.addf %64, %3 : vector<1x128xf32>
    %66 = vector.broadcast %62 : f32 to vector<1x128xf32>
    %67 = arith.addf %65, %66 : vector<1x128xf32>
    %cst_21 = arith.constant dense<0xFF800000> : vector<1xf32>
    %68 = vector.multi_reduction <maximumf>, %67, %cst_21 [1] : vector<1x128xf32> to vector<1xf32>
    %69 = vector.shape_cast %68 : vector<1xf32> to vector<1x1xf32>
    %70 = vector.broadcast %69 : vector<1x1xf32> to vector<1x128xf32>
    %71 = arith.subf %67, %70 : vector<1x128xf32>
    %72 = math.exp %71 : vector<1x128xf32>
    %cst_22 = arith.constant dense<0.000000e+00> : vector<1xf32>
    %73 = vector.multi_reduction <add>, %72, %cst_22 [1] : vector<1x128xf32> to vector<1xf32>
    %74 = vector.shape_cast %73 : vector<1xf32> to vector<1x1xf32>
    %75 = math.log %74 : vector<1x1xf32>
    %76 = arith.addf %75, %69 : vector<1x1xf32>
    %77 = vector.broadcast %76 : vector<1x1xf32> to vector<1x128xf32>
    %78 = arith.subf %67, %77 : vector<1x128xf32>
    %79 = arith.index_cast %c1_i32 : i32 to index
    %c0_23 = arith.constant 0 : index
    %80 = vector.load %arg4[%79, %c0_23] : memref<8x128xf32, #tpu.memory_space<vmem>>, vector<1x128xf32>
    %cst_24 = arith.constant 0.000000e+00 : f32
    %81 = vector.broadcast %cst_24 : f32 to vector<1x128xf32>
    %82 = arith.cmpf ogt, %80, %81 : vector<1x128xf32>
    %cst_25 = arith.constant -1.000000e+08 : f32
    %83 = vector.broadcast %cst_25 : f32 to vector<1x128xf32>
    %84 = arith.select %82, %83, %78 : vector<1x128xi1>, vector<1x128xf32>
    %85 = arith.index_cast %c1_i32 : i32 to index
    %c0_26 = arith.constant 0 : index
    %86 = vector.load %arg8[%85, %c0_26] : memref<8x128xf32, #tpu.memory_space<vmem>>, vector<1x128xf32>
    tpu.vector_store %arg8[%85, %c0_26], %84 {strides = array<i32>} : memref<8x128xf32, #tpu.memory_space<vmem>>, vector<1x128xf32>,
    %c2_i32 = arith.constant 2 : i32
    %87 = arith.index_cast %c2_i32 : i32 to index
    %c0_27 = arith.constant 0 : index
    %c0_28 = arith.constant 0 : index
    %88 = vector.load %arg2[%87, %c0_27, %c0_28] : memref<8x8x128xbf16, #tpu.memory_space<vmem>>, vector<1x8x128xbf16>
    %89 = vector.shape_cast %88 : vector<1x8x128xbf16> to vector<8x128xbf16>
    %90 = arith.index_cast %c2_i32 : i32 to index
    %c0_29 = arith.constant 0 : index
    %c0_30 = arith.constant 0 : index
    %91 = vector.load %arg1[%90, %c0_29, %c0_30] : memref<8x128x128xbf16, #tpu.memory_space<vmem>>, vector<1x128x128xbf16>
    %92 = vector.shape_cast %91 : vector<1x128x128xbf16> to vector<128x128xbf16>
    %cst_31 = arith.constant dense<0.000000e+00> : vector<2x128xf32>
    %93 = tpu.matmul %4, %89, %cst_31 {dimension_numbers = #tpu.dot_dimension_numbers<[1], [0], [0], [1], [0, 0, 1, 1], [], []>} : vector<2x8xbf16>, vector<8x128xbf16>, vector<2x128xf32> -> vector<2x128xf32>
    %94 = vector.extract_strided_slice %93 {offsets = [0, 0], sizes = [1, 128], strides = [1, 1]} : vector<2x128xf32> to vector<1x128xf32>
    %95 = arith.truncf %94 : vector<1x128xf32> to vector<1x128xbf16>
    %cst_32 = arith.constant dense<0.000000e+00> : vector<1x128xf32>
    %96 = tpu.matmul %95, %92, %cst_32 {dimension_numbers = #tpu.dot_dimension_numbers<[1], [0], [0], [1], [0, 0, 1, 1], [], []>} : vector<1x128xbf16>, vector<128x128xbf16>, vector<1x128xf32> -> vector<1x128xf32>
    %97 = vector.extract_strided_slice %93 {offsets = [1, 0], sizes = [1, 128], strides = [1, 1]} : vector<2x128xf32> to vector<1x128xf32>
    %98 = arith.addf %96, %97 : vector<1x128xf32>
    %99 = vector.broadcast %1 : f32 to vector<1x128xf32>
    %100 = arith.addf %98, %99 : vector<1x128xf32>
    %101 = arith.addi %0, %c2_i32 : i32
    %102 = arith.index_cast %101 : i32 to index
    %103 = memref.load %arg6[%102] : memref<16xf32, #tpu.memory_space<smem>>
    %104 = vector.broadcast %2 : f32 to vector<1x128xf32>
    %105 = arith.mulf %100, %104 : vector<1x128xf32>
    %106 = arith.addf %105, %3 : vector<1x128xf32>
    %107 = vector.broadcast %103 : f32 to vector<1x128xf32>
    %108 = arith.addf %106, %107 : vector<1x128xf32>
    %cst_33 = arith.constant dense<0xFF800000> : vector<1xf32>
    %109 = vector.multi_reduction <maximumf>, %108, %cst_33 [1] : vector<1x128xf32> to vector<1xf32>
    %110 = vector.shape_cast %109 : vector<1xf32> to vector<1x1xf32>
    %111 = vector.broadcast %110 : vector<1x1xf32> to vector<1x128xf32>
    %112 = arith.subf %108, %111 : vector<1x128xf32>
    %113 = math.exp %112 : vector<1x128xf32>
    %cst_34 = arith.constant dense<0.000000e+00> : vector<1xf32>
    %114 = vector.multi_reduction <add>, %113, %cst_34 [1] : vector<1x128xf32> to vector<1xf32>
    %115 = vector.shape_cast %114 : vector<1xf32> to vector<1x1xf32>
    %116 = math.log %115 : vector<1x1xf32>
    %117 = arith.addf %116, %110 : vector<1x1xf32>
    %118 = vector.broadcast %117 : vector<1x1xf32> to vector<1x128xf32>
    %119 = arith.subf %108, %118 : vector<1x128xf32>
    %120 = arith.index_cast %c2_i32 : i32 to index
    %c0_35 = arith.constant 0 : index
    %121 = vector.load %arg4[%120, %c0_35] : memref<8x128xf32, #tpu.memory_space<vmem>>, vector<1x128xf32>
    %cst_36 = arith.constant 0.000000e+00 : f32
    %122 = vector.broadcast %cst_36 : f32 to vector<1x128xf32>
    %123 = arith.cmpf ogt, %121, %122 : vector<1x128xf32>
    %cst_37 = arith.constant -1.000000e+08 : f32
    %124 = vector.broadcast %cst_37 : f32 to vector<1x128xf32>
    %125 = arith.select %123, %124, %119 : vector<1x128xi1>, vector<1x128xf32>
    %126 = arith.index_cast %c2_i32 : i32 to index
    %c0_38 = arith.constant 0 : index
    %127 = vector.load %arg8[%126, %c0_38] : memref<8x128xf32, #tpu.memory_space<vmem>>, vector<1x128xf32>
    tpu.vector_store %arg8[%126, %c0_38], %125 {strides = array<i32>} : memref<8x128xf32, #tpu.memory_space<vmem>>, vector<1x128xf32>,
    %c3_i32 = arith.constant 3 : i32
    %128 = arith.index_cast %c3_i32 : i32 to index
    %c0_39 = arith.constant 0 : index
    %c0_40 = arith.constant 0 : index
    %129 = vector.load %arg2[%128, %c0_39, %c0_40] : memref<8x8x128xbf16, #tpu.memory_space<vmem>>, vector<1x8x128xbf16>
    %130 = vector.shape_cast %129 : vector<1x8x128xbf16> to vector<8x128xbf16>
    %131 = arith.index_cast %c3_i32 : i32 to index
    %c0_41 = arith.constant 0 : index
    %c0_42 = arith.constant 0 : index
    %132 = vector.load %arg1[%131, %c0_41, %c0_42] : memref<8x128x128xbf16, #tpu.memory_space<vmem>>, vector<1x128x128xbf16>
    %133 = vector.shape_cast %132 : vector<1x128x128xbf16> to vector<128x128xbf16>
    %cst_43 = arith.constant dense<0.000000e+00> : vector<2x128xf32>
    %134 = tpu.matmul %4, %130, %cst_43 {dimension_numbers = #tpu.dot_dimension_numbers<[1], [0], [0], [1], [0, 0, 1, 1], [], []>} : vector<2x8xbf16>, vector<8x128xbf16>, vector<2x128xf32> -> vector<2x128xf32>
    %135 = vector.extract_strided_slice %134 {offsets = [0, 0], sizes = [1, 128], strides = [1, 1]} : vector<2x128xf32> to vector<1x128xf32>
    %136 = arith.truncf %135 : vector<1x128xf32> to vector<1x128xbf16>
    %cst_44 = arith.constant dense<0.000000e+00> : vector<1x128xf32>
    %137 = tpu.matmul %136, %133, %cst_44 {dimension_numbers = #tpu.dot_dimension_numbers<[1], [0], [0], [1], [0, 0, 1, 1], [], []>} : vector<1x128xbf16>, vector<128x128xbf16>, vector<1x128xf32> -> vector<1x128xf32>
    %138 = vector.extract_strided_slice %134 {offsets = [1, 0], sizes = [1, 128], strides = [1, 1]} : vector<2x128xf32> to vector<1x128xf32>
    %139 = arith.addf %137, %138 : vector<1x128xf32>
    %140 = vector.broadcast %1 : f32 to vector<1x128xf32>
    %141 = arith.addf %139, %140 : vector<1x128xf32>
    %142 = arith.addi %0, %c3_i32 : i32
    %143 = arith.index_cast %142 : i32 to index
    %144 = memref.load %arg6[%143] : memref<16xf32, #tpu.memory_space<smem>>
    %145 = vector.broadcast %2 : f32 to vector<1x128xf32>
    %146 = arith.mulf %141, %145 : vector<1x128xf32>
    %147 = arith.addf %146, %3 : vector<1x128xf32>
    %148 = vector.broadcast %144 : f32 to vector<1x128xf32>
    %149 = arith.addf %147, %148 : vector<1x128xf32>
    %cst_45 = arith.constant dense<0xFF800000> : vector<1xf32>
    %150 = vector.multi_reduction <maximumf>, %149, %cst_45 [1] : vector<1x128xf32> to vector<1xf32>
    %151 = vector.shape_cast %150 : vector<1xf32> to vector<1x1xf32>
    %152 = vector.broadcast %151 : vector<1x1xf32> to vector<1x128xf32>
    %153 = arith.subf %149, %152 : vector<1x128xf32>
    %154 = math.exp %153 : vector<1x128xf32>
    %cst_46 = arith.constant dense<0.000000e+00> : vector<1xf32>
    %155 = vector.multi_reduction <add>, %154, %cst_46 [1] : vector<1x128xf32> to vector<1xf32>
    %156 = vector.shape_cast %155 : vector<1xf32> to vector<1x1xf32>
    %157 = math.log %156 : vector<1x1xf32>
    %158 = arith.addf %157, %151 : vector<1x1xf32>
    %159 = vector.broadcast %158 : vector<1x1xf32> to vector<1x128xf32>
    %160 = arith.subf %149, %159 : vector<1x128xf32>
    %161 = arith.index_cast %c3_i32 : i32 to index
    %c0_47 = arith.constant 0 : index
    %162 = vector.load %arg4[%161, %c0_47] : memref<8x128xf32, #tpu.memory_space<vmem>>, vector<1x128xf32>
    %cst_48 = arith.constant 0.000000e+00 : f32
    %163 = vector.broadcast %cst_48 : f32 to vector<1x128xf32>
    %164 = arith.cmpf ogt, %162, %163 : vector<1x128xf32>
    %cst_49 = arith.constant -1.000000e+08 : f32
    %165 = vector.broadcast %cst_49 : f32 to vector<1x128xf32>
    %166 = arith.select %164, %165, %160 : vector<1x128xi1>, vector<1x128xf32>
    %167 = arith.index_cast %c3_i32 : i32 to index
    %c0_50 = arith.constant 0 : index
    %168 = vector.load %arg8[%167, %c0_50] : memref<8x128xf32, #tpu.memory_space<vmem>>, vector<1x128xf32>
    tpu.vector_store %arg8[%167, %c0_50], %166 {strides = array<i32>} : memref<8x128xf32, #tpu.memory_space<vmem>>, vector<1x128xf32>,
    %c4_i32 = arith.constant 4 : i32
    %169 = arith.index_cast %c4_i32 : i32 to index
    %c0_51 = arith.constant 0 : index
    %c0_52 = arith.constant 0 : index
    %170 = vector.load %arg2[%169, %c0_51, %c0_52] : memref<8x8x128xbf16, #tpu.memory_space<vmem>>, vector<1x8x128xbf16>
    %171 = vector.shape_cast %170 : vector<1x8x128xbf16> to vector<8x128xbf16>
    %172 = arith.index_cast %c4_i32 : i32 to index
    %c0_53 = arith.constant 0 : index
    %c0_54 = arith.constant 0 : index
    %173 = vector.load %arg1[%172, %c0_53, %c0_54] : memref<8x128x128xbf16, #tpu.memory_space<vmem>>, vector<1x128x128xbf16>
    %174 = vector.shape_cast %173 : vector<1x128x128xbf16> to vector<128x128xbf16>
    %cst_55 = arith.constant dense<0.000000e+00> : vector<2x128xf32>
    %175 = tpu.matmul %4, %171, %cst_55 {dimension_numbers = #tpu.dot_dimension_numbers<[1], [0], [0], [1], [0, 0, 1, 1], [], []>} : vector<2x8xbf16>, vector<8x128xbf16>, vector<2x128xf32> -> vector<2x128xf32>
    %176 = vector.extract_strided_slice %175 {offsets = [0, 0], sizes = [1, 128], strides = [1, 1]} : vector<2x128xf32> to vector<1x128xf32>
    %177 = arith.truncf %176 : vector<1x128xf32> to vector<1x128xbf16>
    %cst_56 = arith.constant dense<0.000000e+00> : vector<1x128xf32>
    %178 = tpu.matmul %177, %174, %cst_56 {dimension_numbers = #tpu.dot_dimension_numbers<[1], [0], [0], [1], [0, 0, 1, 1], [], []>} : vector<1x128xbf16>, vector<128x128xbf16>, vector<1x128xf32> -> vector<1x128xf32>
    %179 = vector.extract_strided_slice %175 {offsets = [1, 0], sizes = [1, 128], strides = [1, 1]} : vector<2x128xf32> to vector<1x128xf32>
    %180 = arith.addf %178, %179 : vector<1x128xf32>
    %181 = vector.broadcast %1 : f32 to vector<1x128xf32>
    %182 = arith.addf %180, %181 : vector<1x128xf32>
    %183 = arith.addi %0, %c4_i32 : i32
    %184 = arith.index_cast %183 : i32 to index
    %185 = memref.load %arg6[%184] : memref<16xf32, #tpu.memory_space<smem>>
    %186 = vector.broadcast %2 : f32 to vector<1x128xf32>
    %187 = arith.mulf %182, %186 : vector<1x128xf32>
    %188 = arith.addf %187, %3 : vector<1x128xf32>
    %189 = vector.broadcast %185 : f32 to vector<1x128xf32>
    %190 = arith.addf %188, %189 : vector<1x128xf32>
    %cst_57 = arith.constant dense<0xFF800000> : vector<1xf32>
    %191 = vector.multi_reduction <maximumf>, %190, %cst_57 [1] : vector<1x128xf32> to vector<1xf32>
    %192 = vector.shape_cast %191 : vector<1xf32> to vector<1x1xf32>
    %193 = vector.broadcast %192 : vector<1x1xf32> to vector<1x128xf32>
    %194 = arith.subf %190, %193 : vector<1x128xf32>
    %195 = math.exp %194 : vector<1x128xf32>
    %cst_58 = arith.constant dense<0.000000e+00> : vector<1xf32>
    %196 = vector.multi_reduction <add>, %195, %cst_58 [1] : vector<1x128xf32> to vector<1xf32>
    %197 = vector.shape_cast %196 : vector<1xf32> to vector<1x1xf32>
    %198 = math.log %197 : vector<1x1xf32>
    %199 = arith.addf %198, %192 : vector<1x1xf32>
    %200 = vector.broadcast %199 : vector<1x1xf32> to vector<1x128xf32>
    %201 = arith.subf %190, %200 : vector<1x128xf32>
    %202 = arith.index_cast %c4_i32 : i32 to index
    %c0_59 = arith.constant 0 : index
    %203 = vector.load %arg4[%202, %c0_59] : memref<8x128xf32, #tpu.memory_space<vmem>>, vector<1x128xf32>
    %cst_60 = arith.constant 0.000000e+00 : f32
    %204 = vector.broadcast %cst_60 : f32 to vector<1x128xf32>
    %205 = arith.cmpf ogt, %203, %204 : vector<1x128xf32>
    %cst_61 = arith.constant -1.000000e+08 : f32
    %206 = vector.broadcast %cst_61 : f32 to vector<1x128xf32>
    %207 = arith.select %205, %206, %201 : vector<1x128xi1>, vector<1x128xf32>
    %208 = arith.index_cast %c4_i32 : i32 to index
    %c0_62 = arith.constant 0 : index
    %209 = vector.load %arg8[%208, %c0_62] : memref<8x128xf32, #tpu.memory_space<vmem>>, vector<1x128xf32>
    tpu.vector_store %arg8[%208, %c0_62], %207 {strides = array<i32>} : memref<8x128xf32, #tpu.memory_space<vmem>>, vector<1x128xf32>,
    %c5_i32 = arith.constant 5 : i32
    %210 = arith.index_cast %c5_i32 : i32 to index
    %c0_63 = arith.constant 0 : index
    %c0_64 = arith.constant 0 : index
    %211 = vector.load %arg2[%210, %c0_63, %c0_64] : memref<8x8x128xbf16, #tpu.memory_space<vmem>>, vector<1x8x128xbf16>
    %212 = vector.shape_cast %211 : vector<1x8x128xbf16> to vector<8x128xbf16>
    %213 = arith.index_cast %c5_i32 : i32 to index
    %c0_65 = arith.constant 0 : index
    %c0_66 = arith.constant 0 : index
    %214 = vector.load %arg1[%213, %c0_65, %c0_66] : memref<8x128x128xbf16, #tpu.memory_space<vmem>>, vector<1x128x128xbf16>
    %215 = vector.shape_cast %214 : vector<1x128x128xbf16> to vector<128x128xbf16>
    %cst_67 = arith.constant dense<0.000000e+00> : vector<2x128xf32>
    %216 = tpu.matmul %4, %212, %cst_67 {dimension_numbers = #tpu.dot_dimension_numbers<[1], [0], [0], [1], [0, 0, 1, 1], [], []>} : vector<2x8xbf16>, vector<8x128xbf16>, vector<2x128xf32> -> vector<2x128xf32>
    %217 = vector.extract_strided_slice %216 {offsets = [0, 0], sizes = [1, 128], strides = [1, 1]} : vector<2x128xf32> to vector<1x128xf32>
    %218 = arith.truncf %217 : vector<1x128xf32> to vector<1x128xbf16>
    %cst_68 = arith.constant dense<0.000000e+00> : vector<1x128xf32>
    %219 = tpu.matmul %218, %215, %cst_68 {dimension_numbers = #tpu.dot_dimension_numbers<[1], [0], [0], [1], [0, 0, 1, 1], [], []>} : vector<1x128xbf16>, vector<128x128xbf16>, vector<1x128xf32> -> vector<1x128xf32>
    %220 = vector.extract_strided_slice %216 {offsets = [1, 0], sizes = [1, 128], strides = [1, 1]} : vector<2x128xf32> to vector<1x128xf32>
    %221 = arith.addf %219, %220 : vector<1x128xf32>
    %222 = vector.broadcast %1 : f32 to vector<1x128xf32>
    %223 = arith.addf %221, %222 : vector<1x128xf32>
    %224 = arith.addi %0, %c5_i32 : i32
    %225 = arith.index_cast %224 : i32 to index
    %226 = memref.load %arg6[%225] : memref<16xf32, #tpu.memory_space<smem>>
    %227 = vector.broadcast %2 : f32 to vector<1x128xf32>
    %228 = arith.mulf %223, %227 : vector<1x128xf32>
    %229 = arith.addf %228, %3 : vector<1x128xf32>
    %230 = vector.broadcast %226 : f32 to vector<1x128xf32>
    %231 = arith.addf %229, %230 : vector<1x128xf32>
    %cst_69 = arith.constant dense<0xFF800000> : vector<1xf32>
    %232 = vector.multi_reduction <maximumf>, %231, %cst_69 [1] : vector<1x128xf32> to vector<1xf32>
    %233 = vector.shape_cast %232 : vector<1xf32> to vector<1x1xf32>
    %234 = vector.broadcast %233 : vector<1x1xf32> to vector<1x128xf32>
    %235 = arith.subf %231, %234 : vector<1x128xf32>
    %236 = math.exp %235 : vector<1x128xf32>
    %cst_70 = arith.constant dense<0.000000e+00> : vector<1xf32>
    %237 = vector.multi_reduction <add>, %236, %cst_70 [1] : vector<1x128xf32> to vector<1xf32>
    %238 = vector.shape_cast %237 : vector<1xf32> to vector<1x1xf32>
    %239 = math.log %238 : vector<1x1xf32>
    %240 = arith.addf %239, %233 : vector<1x1xf32>
    %241 = vector.broadcast %240 : vector<1x1xf32> to vector<1x128xf32>
    %242 = arith.subf %231, %241 : vector<1x128xf32>
    %243 = arith.index_cast %c5_i32 : i32 to index
    %c0_71 = arith.constant 0 : index
    %244 = vector.load %arg4[%243, %c0_71] : memref<8x128xf32, #tpu.memory_space<vmem>>, vector<1x128xf32>
    %cst_72 = arith.constant 0.000000e+00 : f32
    %245 = vector.broadcast %cst_72 : f32 to vector<1x128xf32>
    %246 = arith.cmpf ogt, %244, %245 : vector<1x128xf32>
    %cst_73 = arith.constant -1.000000e+08 : f32
    %247 = vector.broadcast %cst_73 : f32 to vector<1x128xf32>
    %248 = arith.select %246, %247, %242 : vector<1x128xi1>, vector<1x128xf32>
    %249 = arith.index_cast %c5_i32 : i32 to index
    %c0_74 = arith.constant 0 : index
    %250 = vector.load %arg8[%249, %c0_74] : memref<8x128xf32, #tpu.memory_space<vmem>>, vector<1x128xf32>
    tpu.vector_store %arg8[%249, %c0_74], %248 {strides = array<i32>} : memref<8x128xf32, #tpu.memory_space<vmem>>, vector<1x128xf32>,
    %c6_i32 = arith.constant 6 : i32
    %251 = arith.index_cast %c6_i32 : i32 to index
    %c0_75 = arith.constant 0 : index
    %c0_76 = arith.constant 0 : index
    %252 = vector.load %arg2[%251, %c0_75, %c0_76] : memref<8x8x128xbf16, #tpu.memory_space<vmem>>, vector<1x8x128xbf16>
    %253 = vector.shape_cast %252 : vector<1x8x128xbf16> to vector<8x128xbf16>
    %254 = arith.index_cast %c6_i32 : i32 to index
    %c0_77 = arith.constant 0 : index
    %c0_78 = arith.constant 0 : index
    %255 = vector.load %arg1[%254, %c0_77, %c0_78] : memref<8x128x128xbf16, #tpu.memory_space<vmem>>, vector<1x128x128xbf16>
    %256 = vector.shape_cast %255 : vector<1x128x128xbf16> to vector<128x128xbf16>
    %cst_79 = arith.constant dense<0.000000e+00> : vector<2x128xf32>
    %257 = tpu.matmul %4, %253, %cst_79 {dimension_numbers = #tpu.dot_dimension_numbers<[1], [0], [0], [1], [0, 0, 1, 1], [], []>} : vector<2x8xbf16>, vector<8x128xbf16>, vector<2x128xf32> -> vector<2x128xf32>
    %258 = vector.extract_strided_slice %257 {offsets = [0, 0], sizes = [1, 128], strides = [1, 1]} : vector<2x128xf32> to vector<1x128xf32>
    %259 = arith.truncf %258 : vector<1x128xf32> to vector<1x128xbf16>
    %cst_80 = arith.constant dense<0.000000e+00> : vector<1x128xf32>
    %260 = tpu.matmul %259, %256, %cst_80 {dimension_numbers = #tpu.dot_dimension_numbers<[1], [0], [0], [1], [0, 0, 1, 1], [], []>} : vector<1x128xbf16>, vector<128x128xbf16>, vector<1x128xf32> -> vector<1x128xf32>
    %261 = vector.extract_strided_slice %257 {offsets = [1, 0], sizes = [1, 128], strides = [1, 1]} : vector<2x128xf32> to vector<1x128xf32>
    %262 = arith.addf %260, %261 : vector<1x128xf32>
    %263 = vector.broadcast %1 : f32 to vector<1x128xf32>
    %264 = arith.addf %262, %263 : vector<1x128xf32>
    %265 = arith.addi %0, %c6_i32 : i32
    %266 = arith.index_cast %265 : i32 to index
    %267 = memref.load %arg6[%266] : memref<16xf32, #tpu.memory_space<smem>>
    %268 = vector.broadcast %2 : f32 to vector<1x128xf32>
    %269 = arith.mulf %264, %268 : vector<1x128xf32>
    %270 = arith.addf %269, %3 : vector<1x128xf32>
    %271 = vector.broadcast %267 : f32 to vector<1x128xf32>
    %272 = arith.addf %270, %271 : vector<1x128xf32>
    %cst_81 = arith.constant dense<0xFF800000> : vector<1xf32>
    %273 = vector.multi_reduction <maximumf>, %272, %cst_81 [1] : vector<1x128xf32> to vector<1xf32>
    %274 = vector.shape_cast %273 : vector<1xf32> to vector<1x1xf32>
    %275 = vector.broadcast %274 : vector<1x1xf32> to vector<1x128xf32>
    %276 = arith.subf %272, %275 : vector<1x128xf32>
    %277 = math.exp %276 : vector<1x128xf32>
    %cst_82 = arith.constant dense<0.000000e+00> : vector<1xf32>
    %278 = vector.multi_reduction <add>, %277, %cst_82 [1] : vector<1x128xf32> to vector<1xf32>
    %279 = vector.shape_cast %278 : vector<1xf32> to vector<1x1xf32>
    %280 = math.log %279 : vector<1x1xf32>
    %281 = arith.addf %280, %274 : vector<1x1xf32>
    %282 = vector.broadcast %281 : vector<1x1xf32> to vector<1x128xf32>
    %283 = arith.subf %272, %282 : vector<1x128xf32>
    %284 = arith.index_cast %c6_i32 : i32 to index
    %c0_83 = arith.constant 0 : index
    %285 = vector.load %arg4[%284, %c0_83] : memref<8x128xf32, #tpu.memory_space<vmem>>, vector<1x128xf32>
    %cst_84 = arith.constant 0.000000e+00 : f32
    %286 = vector.broadcast %cst_84 : f32 to vector<1x128xf32>
    %287 = arith.cmpf ogt, %285, %286 : vector<1x128xf32>
    %cst_85 = arith.constant -1.000000e+08 : f32
    %288 = vector.broadcast %cst_85 : f32 to vector<1x128xf32>
    %289 = arith.select %287, %288, %283 : vector<1x128xi1>, vector<1x128xf32>
    %290 = arith.index_cast %c6_i32 : i32 to index
    %c0_86 = arith.constant 0 : index
    %291 = vector.load %arg8[%290, %c0_86] : memref<8x128xf32, #tpu.memory_space<vmem>>, vector<1x128xf32>
    tpu.vector_store %arg8[%290, %c0_86], %289 {strides = array<i32>} : memref<8x128xf32, #tpu.memory_space<vmem>>, vector<1x128xf32>,
    %c7_i32 = arith.constant 7 : i32
    %292 = arith.index_cast %c7_i32 : i32 to index
    %c0_87 = arith.constant 0 : index
    %c0_88 = arith.constant 0 : index
    %293 = vector.load %arg2[%292, %c0_87, %c0_88] : memref<8x8x128xbf16, #tpu.memory_space<vmem>>, vector<1x8x128xbf16>
    %294 = vector.shape_cast %293 : vector<1x8x128xbf16> to vector<8x128xbf16>
    %295 = arith.index_cast %c7_i32 : i32 to index
    %c0_89 = arith.constant 0 : index
    %c0_90 = arith.constant 0 : index
    %296 = vector.load %arg1[%295, %c0_89, %c0_90] : memref<8x128x128xbf16, #tpu.memory_space<vmem>>, vector<1x128x128xbf16>
    %297 = vector.shape_cast %296 : vector<1x128x128xbf16> to vector<128x128xbf16>
    %cst_91 = arith.constant dense<0.000000e+00> : vector<2x128xf32>
    %298 = tpu.matmul %4, %294, %cst_91 {dimension_numbers = #tpu.dot_dimension_numbers<[1], [0], [0], [1], [0, 0, 1, 1], [], []>} : vector<2x8xbf16>, vector<8x128xbf16>, vector<2x128xf32> -> vector<2x128xf32>
    %299 = vector.extract_strided_slice %298 {offsets = [0, 0], sizes = [1, 128], strides = [1, 1]} : vector<2x128xf32> to vector<1x128xf32>
    %300 = arith.truncf %299 : vector<1x128xf32> to vector<1x128xbf16>
    %cst_92 = arith.constant dense<0.000000e+00> : vector<1x128xf32>
    %301 = tpu.matmul %300, %297, %cst_92 {dimension_numbers = #tpu.dot_dimension_numbers<[1], [0], [0], [1], [0, 0, 1, 1], [], []>} : vector<1x128xbf16>, vector<128x128xbf16>, vector<1x128xf32> -> vector<1x128xf32>
    %302 = vector.extract_strided_slice %298 {offsets = [1, 0], sizes = [1, 128], strides = [1, 1]} : vector<2x128xf32> to vector<1x128xf32>
    %303 = arith.addf %301, %302 : vector<1x128xf32>
    %304 = vector.broadcast %1 : f32 to vector<1x128xf32>
    %305 = arith.addf %303, %304 : vector<1x128xf32>
    %306 = arith.addi %0, %c7_i32 : i32
    %307 = arith.index_cast %306 : i32 to index
    %308 = memref.load %arg6[%307] : memref<16xf32, #tpu.memory_space<smem>>
    %309 = vector.broadcast %2 : f32 to vector<1x128xf32>
    %310 = arith.mulf %305, %309 : vector<1x128xf32>
    %311 = arith.addf %310, %3 : vector<1x128xf32>
    %312 = vector.broadcast %308 : f32 to vector<1x128xf32>
    %313 = arith.addf %311, %312 : vector<1x128xf32>
    %cst_93 = arith.constant dense<0xFF800000> : vector<1xf32>
    %314 = vector.multi_reduction <maximumf>, %313, %cst_93 [1] : vector<1x128xf32> to vector<1xf32>
    %315 = vector.shape_cast %314 : vector<1xf32> to vector<1x1xf32>
    %316 = vector.broadcast %315 : vector<1x1xf32> to vector<1x128xf32>
    %317 = arith.subf %313, %316 : vector<1x128xf32>
    %318 = math.exp %317 : vector<1x128xf32>
    %cst_94 = arith.constant dense<0.000000e+00> : vector<1xf32>
    %319 = vector.multi_reduction <add>, %318, %cst_94 [1] : vector<1x128xf32> to vector<1xf32>
    %320 = vector.shape_cast %319 : vector<1xf32> to vector<1x1xf32>
    %321 = math.log %320 : vector<1x1xf32>
    %322 = arith.addf %321, %315 : vector<1x1xf32>
    %323 = vector.broadcast %322 : vector<1x1xf32> to vector<1x128xf32>
    %324 = arith.subf %313, %323 : vector<1x128xf32>
    %325 = arith.index_cast %c7_i32 : i32 to index
    %c0_95 = arith.constant 0 : index
    %326 = vector.load %arg4[%325, %c0_95] : memref<8x128xf32, #tpu.memory_space<vmem>>, vector<1x128xf32>
    %cst_96 = arith.constant 0.000000e+00 : f32
    %327 = vector.broadcast %cst_96 : f32 to vector<1x128xf32>
    %328 = arith.cmpf ogt, %326, %327 : vector<1x128xf32>
    %cst_97 = arith.constant -1.000000e+08 : f32
    %329 = vector.broadcast %cst_97 : f32 to vector<1x128xf32>
    %330 = arith.select %328, %329, %324 : vector<1x128xi1>, vector<1x128xf32>
    %331 = arith.index_cast %c7_i32 : i32 to index
    %c0_98 = arith.constant 0 : index
    %332 = vector.load %arg8[%331, %c0_98] : memref<8x128xf32, #tpu.memory_space<vmem>>, vector<1x128xf32>
    tpu.vector_store %arg8[%331, %c0_98], %330 {strides = array<i32>} : memref<8x128xf32, #tpu.memory_space<vmem>>, vector<1x128xf32>,
    %c8_i32_99 = arith.constant 8 : i32
    return
  }
  func.func @transform_0(%arg0: i32) -> (i32, i32, i32) {
    %c0_i32 = arith.constant 0 : i32
    %c0_i32_0 = arith.constant 0 : i32
    %c0_i32_1 = arith.constant 0 : i32
    return %arg0, %c0_i32, %c0_i32_0 : i32, i32, i32
  }
  func.func @transform_1(%arg0: i32) -> (i32, i32, i32) {
    %c0_i32 = arith.constant 0 : i32
    %c0_i32_0 = arith.constant 0 : i32
    %c0_i32_1 = arith.constant 0 : i32
    return %arg0, %c0_i32, %c0_i32_0 : i32, i32, i32
  }
  func.func @transform_2(%arg0: i32) -> (i32, i32) {
    %c0_i32 = arith.constant 0 : i32
    %c0_i32_0 = arith.constant 0 : i32
    %c0_i32_1 = arith.constant 0 : i32
    return %c0_i32, %c0_i32_0 : i32, i32
  }
  func.func @transform_3(%arg0: i32) -> (i32, i32) {
    %c0_i32 = arith.constant 0 : i32
    %c0_i32_0 = arith.constant 0 : i32
    return %arg0, %c0_i32 : i32, i32
  }
  func.func @transform_4(%arg0: i32) -> (i32, i32) {
    %c0_i32 = arith.constant 0 : i32
    %c0_i32_0 = arith.constant 0 : i32
    %c0_i32_1 = arith.constant 0 : i32
    return %c0_i32, %c0_i32_0 : i32, i32
  }
  func.func @transform_5(%arg0: i32) -> i32 {
    %c0_i32 = arith.constant 0 : i32
    %c0_i32_0 = arith.constant 0 : i32
    return %c0_i32 : i32
  }
  func.func @transform_6(%arg0: i32) -> i32 {
    %c0_i32 = arith.constant 0 : i32
    %c0_i32_0 = arith.constant 0 : i32
    return %c0_i32 : i32
  }
  func.func @transform_7(%arg0: i32) -> (i32, i32) {
    %c0_i32 = arith.constant 0 : i32
    %c0_i32_0 = arith.constant 0 : i32
    return %arg0, %c0_i32 : i32, i32
  }
}

</mosaic_0001>

<llo_original>
// kernel: tpu_custom_call.1
$region0: #{tpu_custom_call.1}
  #allocation0 [shape = 'u32[]', space=smem, size = 0x4, offset = 0x4, fixed_abs, tag = 'smem constant byte address 0x4 - core index']
  #allocation1 [shape = 'u32[144,128]{1,0:T(1,128)}', space=vmem, size = 0x12000, scoped, tag = 'internal scratch']
  %s0 = inlined_call_operand.hbm [shape: bf16[16,128,128], index: 0, kind: input, shape index: {}]
  %s1 = inlined_call_operand.hbm [shape: bf16[16,8,128], index: 1, kind: input, shape index: {}]
  %s2 = inlined_call_operand.vmem [shape: f32[1,128], index: 2, kind: input, shape index: {}]
  %s3 = inlined_call_operand.hbm [shape: f32[16,128], index: 3, kind: input, shape index: {}]
  %s4 = inlined_call_operand.vmem [shape: bf16[2,8], index: 4, kind: input, shape index: {}]
  %s5 = inlined_call_operand.vmem [shape: f32[16], index: 5, kind: input, shape index: {}]
  %s6 = inlined_call_operand.vmem [shape: f32[2], index: 6, kind: input, shape index: {}]
  %s7 = inlined_call_operand.hbm [shape: f32[16,128], index: 7, kind: output, shape index: {}]
  %s8 = sld [smem:[#allocation0]]
  $region81: #{tpu_custom_call.1} parent=0
    _
  %s10 = ssub.s32 1, %s8
  %s11 = scalar_select 0, %s10, %s8
  $region1: #{tpu_custom_call.1} parent=0
    #allocation2 [shape = 'u8[524288]{0}', space=vmem, size = 0x80000, scoped, tag = 'input window, operand 0']
    #allocation3 [shape = 's32[2]{0}', space=sflag, size = 0x8, scoped, tag = 'scoped memory for tpu_custom_call.1']
    #allocation4 [shape = 's32[2]{0}', space=sflag, size = 0x8, scoped, tag = 'scoped memory for tpu_custom_call.1']
    #allocation5 [shape = 's32[2]{0}', space=sflag, size = 0x8, scoped, tag = 'scoped memory for tpu_custom_call.1']
    #allocation6 [shape = 'u8[32768]{0}', space=vmem, size = 0x8000, scoped, tag = 'input window, operand 1']
    #allocation7 [shape = 's32[2]{0}', space=sflag, size = 0x8, scoped, tag = 'scoped memory for tpu_custom_call.1']
    #allocation8 [shape = 'u8[8192]{0}', space=vmem, size = 0x2000, scoped, tag = 'input window, operand 3']
    #allocation9 [shape = 'u8[512]{0}', space=smem, size = 0x200, scoped, tag = 'input window, operand 5, single buffered']
    #allocation10 [shape = 'u8[512]{0}', space=smem, size = 0x200, scoped, tag = 'input window, operand 6, single buffered']
    #allocation11 [shape = 's32[1]{0}', space=sflag, size = 0x4, scoped, tag = 'scoped memory for tpu_custom_call.1']
    #allocation12 [shape = 'u8[8192]{0}', space=vmem, size = 0x2000, scoped, tag = 'output window, operand 0']
    %12 = vsyncpa [#allocation3], 0
    %s13 = scalar_lea.sflag [#allocation3], 1
    %14 = vsyncpa %s13, 0
    %15 = vsyncpa [#allocation7], 0
    %s16 = scalar_lea.sflag [#allocation7], 1
    %17 = vsyncpa %s16, 0
    %18 = vsyncpa [#allocation5], 0
    %19 = vsyncpa [#allocation11], 0
    %20 = vsyncpa [#allocation4], 0
    %s21 = scalar_lea.sflag [#allocation4], 1
    %22 = vsyncpa %s21, 0
    loop: start=0, step=1, limit=4
    $region2: #{tpu_custom_call.1} parent=1 // loop_pre_header
      _
    $region3: #{tpu_custom_call.1} parent=1 // loop_header
      %s24 = sphi 0, %s28
      %p25 = scmp.ge.s32.totalorder %s24, 4
      %s34 = sphi 0, %s36
      %s37 = sphi 0, %s34
      %s38 = sphi 0, %s37
      %s54 = sphi 0, %s38
      %s60 = sphi 0, %s62
      %s63 = sphi 0, %s60
      %s64 = sphi 0, %s63
      %s80 = sphi 0, %s64
      %s84 = sphi 0, %s84
      %s86 = sphi 0, %s84
      %s87 = sphi 0, %s86
      %s101 = sphi 0, %s87
      %s107 = sphi 0, %s109
      %s110 = sphi 0, %s107
      %s111 = sphi 0, %s110
      %s127 = sphi 0, %s111
      %s131 = sphi 0, %s131
      %s133 = sphi 0, %s131
      %s134 = sphi 0, %s133
      %s148 = sphi 0, %s134
      %s152 = sphi 0, %s152
      %s154 = sphi 0, %s152
      %s155 = sphi 0, %s154
      %s169 = sphi 0, %s155
      %s173 = sphi 0, %s173
      %s175 = sphi 0, %s173
      %s176 = sphi 0, %s175
      %s190 = sphi 0, %s176
      %s196 = sphi 0, %s198
      %s199 = sphi 0, %s196
      %s200 = sphi 0, %s199
      %s216 = sphi 0, %s200
    $region4: #{tpu_custom_call.1} parent=1 // loop_header_branch
      %27 = sbr.rel (%p25) target = $region8
    $region5: #{tpu_custom_call.1} parent=1 // loop_body
      %s29 = ssub.s32 %s24, 1
      %s30 = ssub.s32 %s24, 2
      %s31 = sadd.s32 %s24, 1
      %s32 = ssub.s32 %s24, %s31
      %p33 = scmp.eq.s32.totalorder %s32, 0
      %s35 = sadd.s32 %s34, 1
      %s36 = scalar_select %p33, %s34, %s35
      %p39 = pneg %p33
      %p40 = scmp.eq.s32.totalorder %s24, 1
      %p41 = por %p39, %p40
      %p42 = scmp.ne.s32.totalorder %s34, %s37
      %p43 = scmp.eq.s32.totalorder %s24, 0
      %p44 = por %p42, %p43
      %p45 = scmp.ne.s32.totalorder %s34, %s37
      %p46 = scmp.eq.s32.totalorder %s29, 1
      %p47 = por %p45, %p46
      %p48 = scmp.ne.s32.totalorder %s37, %s38
      %p49 = scmp.eq.s32.totalorder %s29, 0
      %p50 = por %p48, %p49
      %p51 = scmp.ne.s32.totalorder %s37, %s38
      %p52 = scmp.eq.s32.totalorder %s30, 1
      %p53 = por %p51, %p52
      %p55 = scmp.ne.s32.totalorder %s38, %s54
      %p56 = scmp.eq.s32.totalorder %s30, 0
      %p57 = por %p55, %p56
      %s58 = ssub.s32 %s24, %s31
      %p59 = scmp.eq.s32.totalorder %s58, 0
      %s61 = sadd.s32 %s60, 1
      %s62 = scalar_select %p59, %s60, %s61
      %p65 = pneg %p59
      %p66 = scmp.eq.s32.totalorder %s24, 1
      %p67 = por %p65, %p66
      %p68 = scmp.ne.s32.totalorder %s60, %s63
      %p69 = scmp.eq.s32.totalorder %s24, 0
      %p70 = por %p68, %p69
      %p71 = scmp.ne.s32.totalorder %s60, %s63
      %p72 = scmp.eq.s32.totalorder %s29, 1
      %p73 = por %p71, %p72
      %p74 = scmp.ne.s32.totalorder %s63, %s64
      %p75 = scmp.eq.s32.totalorder %s29, 0
      %p76 = por %p74, %p75
      %p77 = scmp.ne.s32.totalorder %s63, %s64
      %p78 = scmp.eq.s32.totalorder %s30, 1
      %p79 = por %p77, %p78
      %p81 = scmp.ne.s32.totalorder %s64, %s80
      %p82 = scmp.eq.s32.totalorder %s30, 0
      %p83 = por %p81, %p82
      %s85 = sadd.s32 %s84, 1
      %p88 = scmp.eq.s32.totalorder %s24, 1
      %p89 = scmp.ne.s32.totalorder %s84, %s86
      %p90 = scmp.eq.s32.totalorder %s24, 0
      %p91 = por %p89, %p90
      %p92 = scmp.ne.s32.totalorder %s84, %s86
      %p93 = scmp.eq.s32.totalorder %s29, 1
      %p94 = por %p92, %p93
      %p95 = scmp.ne.s32.totalorder %s86, %s87
      %p96 = scmp.eq.s32.totalorder %s29, 0
      %p97 = por %p95, %p96
      %p98 = scmp.ne.s32.totalorder %s86, %s87
      %p99 = scmp.eq.s32.totalorder %s30, 1
      %p100 = por %p98, %p99
      %p102 = scmp.ne.s32.totalorder %s87, %s101
      %p103 = scmp.eq.s32.totalorder %s30, 0
      %p104 = por %p102, %p103
      %s105 = ssub.s32 %s24, %s31
      %p106 = scmp.eq.s32.totalorder %s105, 0
      %s108 = sadd.s32 %s107, 1
      %s109 = scalar_select %p106, %s107, %s108
      %p112 = pneg %p106
      %p113 = scmp.eq.s32.totalorder %s24, 1
      %p114 = por %p112, %p113
      %p115 = scmp.ne.s32.totalorder %s107, %s110
      %p116 = scmp.eq.s32.totalorder %s24, 0
      %p117 = por %p115, %p116
      %p118 = scmp.ne.s32.totalorder %s107, %s110
      %p119 = scmp.eq.s32.totalorder %s29, 1
      %p120 = por %p118, %p119
      %p121 = scmp.ne.s32.totalorder %s110, %s111
      %p122 = scmp.eq.s32.totalorder %s29, 0
      %p123 = por %p121, %p122
      %p124 = scmp.ne.s32.totalorder %s110, %s111
      %p125 = scmp.eq.s32.totalorder %s30, 1
      %p126 = por %p124, %p125
      %p128 = scmp.ne.s32.totalorder %s111, %s127
      %p129 = scmp.eq.s32.totalorder %s30, 0
      %p130 = por %p128, %p129
      %s132 = sadd.s32 %s131, 1
      %p135 = scmp.eq.s32.totalorder %s24, 1
      %p136 = scmp.ne.s32.totalorder %s131, %s133
      %p137 = scmp.eq.s32.totalorder %s24, 0
      %p138 = por %p136, %p137
      %p139 = scmp.ne.s32.totalorder %s131, %s133
      %p140 = scmp.eq.s32.totalorder %s29, 1
      %p141 = por %p139, %p140
      %p142 = scmp.ne.s32.totalorder %s133, %s134
      %p143 = scmp.eq.s32.totalorder %s29, 0
      %p144 = por %p142, %p143
      %p145 = scmp.ne.s32.totalorder %s133, %s134
      %p146 = scmp.eq.s32.totalorder %s30, 1
      %p147 = por %p145, %p146
      %p149 = scmp.ne.s32.totalorder %s134, %s148
      %p150 = scmp.eq.s32.totalorder %s30, 0
      %p151 = por %p149, %p150
      %s153 = sadd.s32 %s152, 1
      %p156 = scmp.eq.s32.totalorder %s24, 1
      %p157 = scmp.ne.s32.totalorder %s152, %s154
      %p158 = scmp.eq.s32.totalorder %s24, 0
      %p159 = por %p157, %p158
      %p160 = scmp.ne.s32.totalorder %s152, %s154
      %p161 = scmp.eq.s32.totalorder %s29, 1
      %p162 = por %p160, %p161
      %p163 = scmp.ne.s32.totalorder %s154, %s155
      %p164 = scmp.eq.s32.totalorder %s29, 0
      %p165 = por %p163, %p164
      %p166 = scmp.ne.s32.totalorder %s154, %s155
      %p167 = scmp.eq.s32.totalorder %s30, 1
      %p168 = por %p166, %p167
      %p170 = scmp.ne.s32.totalorder %s155, %s169
      %p171 = scmp.eq.s32.totalorder %s30, 0
      %p172 = por %p170, %p171
      %s174 = sadd.s32 %s173, 1
      %p177 = scmp.eq.s32.totalorder %s24, 1
      %p178 = scmp.ne.s32.totalorder %s173, %s175
      %p179 = scmp.eq.s32.totalorder %s24, 0
      %p180 = por %p178, %p179
      %p181 = scmp.ne.s32.totalorder %s173, %s175
      %p182 = scmp.eq.s32.totalorder %s29, 1
      %p183 = por %p181, %p182
      %p184 = scmp.ne.s32.totalorder %s175, %s176
      %p185 = scmp.eq.s32.totalorder %s29, 0
      %p186 = por %p184, %p185
      %p187 = scmp.ne.s32.totalorder %s175, %s176
      %p188 = scmp.eq.s32.totalorder %s30, 1
      %p189 = por %p187, %p188
      %p191 = scmp.ne.s32.totalorder %s176, %s190
      %p192 = scmp.eq.s32.totalorder %s30, 0
      %p193 = por %p191, %p192
      %s194 = ssub.s32 %s24, %s31
      %p195 = scmp.eq.s32.totalorder %s194, 0
      %s197 = sadd.s32 %s196, 1
      %s198 = scalar_select %p195, %s196, %s197
      %p201 = pneg %p195
      %p202 = scmp.eq.s32.totalorder %s24, 1
      %p203 = por %p201, %p202
      %p204 = scmp.ne.s32.totalorder %s196, %s199
      %p205 = scmp.eq.s32.totalorder %s24, 0
      %p206 = por %p204, %p205
      %p207 = scmp.ne.s32.totalorder %s196, %s199
      %p208 = scmp.eq.s32.totalorder %s29, 1
      %p209 = por %p207, %p208
      %p210 = scmp.ne.s32.totalorder %s199, %s200
      %p211 = scmp.eq.s32.totalorder %s29, 0
      %p212 = por %p210, %p211
      %p213 = scmp.ne.s32.totalorder %s199, %s200
      %p214 = scmp.eq.s32.totalorder %s30, 1
      %p215 = por %p213, %p214
      %p217 = scmp.ne.s32.totalorder %s200, %s216
      %p218 = scmp.eq.s32.totalorder %s30, 0
      %p219 = por %p217, %p218
      %p220 = scmp.le.s32.totalorder 1, %s24
      %p221 = scmp.lt.s32.totalorder %s24, 3
      %p222 = pnand %p220, %p221
      %p223 = pneg %p222
      // Predicated region
      $region9: #{tpu_custom_call.1} parent=5 // pred_check
        _
      $region10: #{tpu_custom_call.1} parent=5 // pred_check_branch
        %225 = sbr.rel (%p222) target = $region12
      $region11: #{tpu_custom_call.1} parent=5 // pred_region
        %s226 = ssub.s32 %s24, 1
        // Predicated region
        $region13: #{tpu_custom_call.1} parent=11 // pred_check
          %p227 = pneg %p97
        $region14: #{tpu_custom_call.1} parent=11 // pred_check_branch
          %229 = sbr.rel (%p227) target = $region16
        $region15: #{tpu_custom_call.1} parent=11 // pred_region
          _
        $region16: #{tpu_custom_call.1} parent=11 // pred_fallthru
          _
        // Predicated region
        $region17: #{tpu_custom_call.1} parent=11 // pred_check
          %p230 = pneg %p144
        $region18: #{tpu_custom_call.1} parent=11 // pred_check_branch
          %232 = sbr.rel (%p230) target = $region20
        $region19: #{tpu_custom_call.1} parent=11 // pred_region
          _
        $region20: #{tpu_custom_call.1} parent=11 // pred_fallthru
          _
        // Predicated region
        $region21: #{tpu_custom_call.1} parent=11 // pred_check
          %p233 = pneg %p165
        $region22: #{tpu_custom_call.1} parent=11 // pred_check_branch
          %235 = sbr.rel (%p233) target = $region24
        $region23: #{tpu_custom_call.1} parent=11 // pred_region
          %s237 = ssub.s32 16, 16
          %238 = vsyncadd [#allocation5], %s237
          %s240 = sshll.u32 %s5, 4
          %s241 = int_to_ptr.vmem [resolvable:$true] %s240
          %243 = dma.vmem_to_smem %s241, 16, [#allocation9], [#allocation5]
        $region24: #{tpu_custom_call.1} parent=11 // pred_fallthru
          _
        // Predicated region
        $region25: #{tpu_custom_call.1} parent=11 // pred_check
          %p244 = pneg %p186
        $region26: #{tpu_custom_call.1} parent=11 // pred_check_branch
          %246 = sbr.rel (%p244) target = $region28
        $region27: #{tpu_custom_call.1} parent=11 // pred_region
          %s248 = ssub.s32 16, 16
          %249 = vsyncadd [#allocation11], %s248
          %s251 = sshll.u32 %s6, 4
          %s252 = int_to_ptr.vmem [resolvable:$true] %s251
          %254 = dma.vmem_to_smem %s252, 16, [#allocation10], [#allocation11]
        $region28: #{tpu_custom_call.1} parent=11 // pred_fallthru
          _
      $region12: #{tpu_custom_call.1} parent=5 // pred_fallthru
        _
      %p255 = scmp.lt.s32.totalorder %s24, 2
      // Predicated region
      $region29: #{tpu_custom_call.1} parent=5 // pred_check
        %p256 = pneg %p255
      $region30: #{tpu_custom_call.1} parent=5 // pred_check_branch
        %258 = sbr.rel (%p256) target = $region32
      $region31: #{tpu_custom_call.1} parent=5 // pred_region
        // Predicated region
        $region33: #{tpu_custom_call.1} parent=31 // pred_check
          %p259 = pneg %p44
        $region34: #{tpu_custom_call.1} parent=31 // pred_check_branch
          %261 = sbr.rel (%p259) target = $region36
        $region35: #{tpu_custom_call.1} parent=31 // pred_region
          %s262 = sand.u32 %s34, 1
          %s263 = scalar_lea.sflag [#allocation3], %s262
          %s264 = sand.u32 %s34, 1
          %s265 = smul.addr %s264, 512
          %s266 = scalar_lea.vmem [#allocation2], %s265
          %s267 = smul.u32 8, %s24
          %s269 = ssub.s32 8192, 8192
          %270 = vsyncadd %s263, %s269
          %s271 = smul.addr %s267, 16
          %s272 = smul.addr %s271, 64
          %s273 = scalar_lea.hbm %s0, %s272
          %s274 = sshll.u32 %s266, 4
          %s275 = int_to_ptr.vmem [resolvable:$true] %s274
          %280 = dma.hbm_to_vmem [thread:$0]  %s273, 8192, %s275, %s263, 64, 64, 4
        $region36: #{tpu_custom_call.1} parent=31 // pred_fallthru
          _
        // Predicated region
        $region37: #{tpu_custom_call.1} parent=31 // pred_check
          %p281 = pneg %p70
        $region38: #{tpu_custom_call.1} parent=31 // pred_check_branch
          %283 = sbr.rel (%p281) target = $region40
        $region39: #{tpu_custom_call.1} parent=31 // pred_region
          %s284 = sand.u32 %s24, 1
          %s285 = scalar_lea.sflag [#allocation7], %s284
          %s286 = sand.u32 %s60, 1
          %s287 = smul.addr %s286, 32
          %s288 = scalar_lea.vmem [#allocation6], %s287
          %s289 = smul.u32 8, %s24
          %s291 = ssub.s32 512, 512
          %292 = vsyncadd %s285, %s291
          %s293 = smul.addr %s289, 64
          %s294 = scalar_lea.hbm %s1, %s293
          %s295 = sshll.u32 %s288, 4
          %s296 = int_to_ptr.vmem [resolvable:$true] %s295
          %301 = dma.hbm_to_vmem [thread:$0]  %s294, 512, %s296, %s285, 64, 64, 4
        $region40: #{tpu_custom_call.1} parent=31 // pred_fallthru
          _
        // Predicated region
        $region41: #{tpu_custom_call.1} parent=31 // pred_check
          %p302 = pneg %p117
        $region42: #{tpu_custom_call.1} parent=31 // pred_check_branch
          %304 = sbr.rel (%p302) target = $region44
        $region43: #{tpu_custom_call.1} parent=31 // pred_region
          %s305 = sand.u32 %s24, 1
          %s306 = scalar_lea.sflag [#allocation7], %s305
          %s307 = sand.u32 %s107, 1
          %s308 = smul.addr %s307, 8
          %s309 = scalar_lea.vmem [#allocation8], %s308
          %s311 = ssub.s32 128, 128
          %312 = vsyncadd %s306, %s311
          %s313 = smul.addr %s24, 128
          %s314 = scalar_lea.hbm %s3, %s313
          %s316 = sshll.u32 %s309, 4
          %s317 = int_to_ptr.vmem [resolvable:$true] %s316
          %319 = dma.hbm_to_vmem [thread:$0]  %s314, 128, %s317, %s306
        $region44: #{tpu_custom_call.1} parent=31 // pred_fallthru
          _
      $region32: #{tpu_custom_call.1} parent=5 // pred_fallthru
        _
      %p320 = scmp.le.s32.totalorder 1, %s24
      %p321 = scmp.lt.s32.totalorder %s24, 3
      %p322 = pnand %p320, %p321
      %p323 = pneg %p322
      // Predicated region
      $region45: #{tpu_custom_call.1} parent=5 // pred_check
        _
      $region46: #{tpu_custom_call.1} parent=5 // pred_check_branch
        %325 = sbr.rel (%p322) target = $region48
      $region47: #{tpu_custom_call.1} parent=5 // pred_region
        %s326 = ssub.s32 %s24, 1
        %s327 = sand.u32 %s37, 1
        %s328 = scalar_lea.sflag [#allocation3], %s327
        %s329 = sand.u32 %s37, 1
        %s330 = smul.addr %s329, 512
        %s331 = scalar_lea.vmem [#allocation2], %s330
        // Predicated region
        $region49: #{tpu_custom_call.1} parent=47 // pred_check
          %p332 = pneg %p50
        $region50: #{tpu_custom_call.1} parent=47 // pred_check_branch
          %334 = sbr.rel (%p332) target = $region52
        $region51: #{tpu_custom_call.1} parent=47 // pred_region
          %335 = dma.done %s328, 8192
        $region52: #{tpu_custom_call.1} parent=47 // pred_fallthru
          _
        %s336 = sand.u32 %s29, 1
        %s337 = scalar_lea.sflag [#allocation7], %s336
        %s338 = sand.u32 %s63, 1
        %s339 = smul.addr %s338, 32
        %s340 = scalar_lea.vmem [#allocation6], %s339
        // Predicated region
        $region53: #{tpu_custom_call.1} parent=47 // pred_check
          %p341 = pneg %p76
        $region54: #{tpu_custom_call.1} parent=47 // pred_check_branch
          %343 = sbr.rel (%p341) target = $region56
        $region55: #{tpu_custom_call.1} parent=47 // pred_region
          %344 = dma.done %s337, 512
        $region56: #{tpu_custom_call.1} parent=47 // pred_fallthru
          _
        %s345 = sand.u32 %s29, 1
        %s346 = scalar_lea.sflag [#allocation7], %s345
        %s347 = sand.u32 %s110, 1
        %s348 = smul.addr %s347, 8
        %s349 = scalar_lea.vmem [#allocation8], %s348
        // Predicated region
        $region57: #{tpu_custom_call.1} parent=47 // pred_check
          %p350 = pneg %p123
        $region58: #{tpu_custom_call.1} parent=47 // pred_check_branch
          %352 = sbr.rel (%p350) target = $region60
        $region59: #{tpu_custom_call.1} parent=47 // pred_region
          %353 = dma.done %s346, 128
        $region60: #{tpu_custom_call.1} parent=47 // pred_fallthru
          _
        // Predicated region
        $region61: #{tpu_custom_call.1} parent=47 // pred_check
          %p354 = pneg %p165
        $region62: #{tpu_custom_call.1} parent=47 // pred_check_branch
          %356 = sbr.rel (%p354) target = $region64
        $region63: #{tpu_custom_call.1} parent=47 // pred_region
          %357 = dma.done [#allocation5], 16
        $region64: #{tpu_custom_call.1} parent=47 // pred_fallthru
          _
        // Predicated region
        $region65: #{tpu_custom_call.1} parent=47 // pred_check
          %p358 = pneg %p186
        $region66: #{tpu_custom_call.1} parent=47 // pred_check_branch
          %360 = sbr.rel (%p358) target = $region68
        $region67: #{tpu_custom_call.1} parent=47 // pred_region
          %361 = dma.done [#allocation11], 16
        $region68: #{tpu_custom_call.1} parent=47 // pred_fallthru
          _
        %362 = sfence
        %s363 = sand.u32 %s37, 1
        %s364 = scalar_lea.sflag [#allocation3], %s363
        %s365 = sand.u32 %s37, 1
        %s366 = smul.addr %s365, 512
        %s367 = scalar_lea.vmem [#allocation2], %s366
        %p368 = pneg %p50
        %p369 = pneg %p47
        %s370 = sand.u32 %s29, 1
        %s371 = scalar_lea.sflag [#allocation7], %s370
        %s372 = sand.u32 %s63, 1
        %s373 = smul.addr %s372, 32
        %s374 = scalar_lea.vmem [#allocation6], %s373
        %p375 = pneg %p76
        %p376 = pneg %p73
        %p377 = pneg %p97
        %p378 = pneg %p94
        %s379 = sand.u32 %s29, 1
        %s380 = scalar_lea.sflag [#allocation7], %s379
        %s381 = sand.u32 %s110, 1
        %s382 = smul.addr %s381, 8
        %s383 = scalar_lea.vmem [#allocation8], %s382
        %p384 = pneg %p123
        %p385 = pneg %p120
        %p386 = pneg %p144
        %p387 = pneg %p141
        %p388 = pneg %p165
        %p389 = pneg %p162
        %p390 = pneg %p186
        %p391 = pneg %p183
        %p392 = pneg %p212
        %p393 = pneg %p209
        %s394 = sand.u32 %s199, 1
        %s395 = scalar_lea.sflag [#allocation4], %s394
        %s396 = sand.u32 %s199, 1
        %s397 = smul.addr %s396, 8
        %s398 = scalar_lea.vmem [#allocation12], %s397
        %s399 = smul.u32 8, %s29
        %s400 = smul.u32 8, %s29
        %s402 = smul.u32 %s29, 8
        %s403 = sld [smem:[#allocation10]]
        %s404 = sld [smem:[#allocation10 + $0x1]]
        %v405 = vld [vmem:[%s2] sm:$0x1]
        %v406 = vld [vmem:[%s4] sm:$0x1]
        %v407 = vld [vmem:[%s340] sm:$0xf]
        %v408 = vld [vmem:[%s331] sm:$0xf]
        %v409 = vld [vmem:[%s331 + $0x4] sm:$0xf]
        %v410 = vld [vmem:[%s331 + $0x8] sm:$0xf]
        %v411 = vld [vmem:[%s331 + $0xc] sm:$0xf]
        %v412 = vld [vmem:[%s331 + $0x10] sm:$0xf]
        %v413 = vld [vmem:[%s331 + $0x14] sm:$0xf]
        %v414 = vld [vmem:[%s331 + $0x18] sm:$0xf]
        %v415 = vld [vmem:[%s331 + $0x1c] sm:$0xf]
        %v416 = vld [vmem:[%s331 + $0x20] sm:$0xf]
        %v417 = vld [vmem:[%s331 + $0x24] sm:$0xf]
        %v418 = vld [vmem:[%s331 + $0x28] sm:$0xf]
        %v419 = vld [vmem:[%s331 + $0x2c] sm:$0xf]
        %v420 = vld [vmem:[%s331 + $0x30] sm:$0xf]
        %v421 = vld [vmem:[%s331 + $0x34] sm:$0xf]
        %v422 = vld [vmem:[%s331 + $0x38] sm:$0xf]
        %v423 = vld [vmem:[%s331 + $0x3c] sm:$0xf]
        %vm424 = vcmask 64512
        %v426 = vsel %vm424, %v406, 0
        %vm428 = vcmask 1043456
        %v430 = vsel %vm428, %v407, 0
        %432 = vmatprep.subr.bf16.mxu0 0
        %433 = vmatpush1.bf16.msra.mxu0 %v430
        %434 = vmatprep.subr.bf16.mxu0 0
        %435 = vmatpush1.bf16.msra.mxu0 0
        %436 = vmatprep.subr.bf16.mxu0 0
        %437 = vmatpush1.bf16.msra.mxu0 0
        %438 = vmatprep.subr.bf16.mxu0 0
        %439 = vmatpush1.bf16.msra.mxu0 0
        %440 = vmatprep.subr.bf16.mxu0 0
        %441 = vmatpush1.bf16.msra.mxu0 0
        %442 = vmatprep.subr.bf16.mxu0 0
        %443 = vmatpush1.bf16.msra.mxu0 0
        %444 = vmatprep.subr.bf16.mxu0 0
        %445 = vmatpush1.bf16.msra.mxu0 0
        %446 = vmatprep.subr.bf16.mxu0 0
        %447 = vmatpush1.bf16.msra.mxu0 0
        %448 = vmatprep.subr.bf16.mxu0 0
        %449 = vmatpush1.bf16.msra.mxu0 0
        %450 = vmatprep.subr.bf16.mxu0 0
        %451 = vmatpush1.bf16.msra.mxu0 0
        %452 = vmatprep.subr.bf16.mxu0 0
        %453 = vmatpush1.bf16.msra.mxu0 0
        %454 = vmatprep.subr.bf16.mxu0 0
        %455 = vmatpush1.bf16.msra.mxu0 0
        %456 = vmatprep.subr.bf16.mxu0 0
        %457 = vmatpush1.bf16.msra.mxu0 0
        %458 = vmatprep.subr.bf16.mxu0 0
        %459 = vmatpush1.bf16.msra.mxu0 0
        %460 = vmatprep.subr.bf16.mxu0 0
        %461 = vmatpush1.bf16.msra.mxu0 0
        %462 = vmatprep.subr.bf16.mxu0 0
        %463 = vmatpush1.bf16.msra.mxu0 0
        %464 = vmatprep.mubr.bf16.mxu0 0
        %465 = vmatmul.mubr.bf16.gmra.mrb[0].mxu0 %v426
        %v466 = vpop.f32.mrb[0].mxu0
        %v467 = vadd.f32 0.0, %v466
        %v468 = vpop.f32.mrb[0].mxu0
        %v469 = vpop.f32.mrb[0].mxu0
        %v470 = vpop.f32.mrb[0].mxu0
        %471 = vdwg.mxu0
        %v472 = vpack.c.bf16 %v467, %v467
        %v489 = vunpack.c.l.b16 %v408
        %v490 = vunpack.c.l.b16 %v409
        %v491 = vunpack.c.l.b16 %v410
        %v492 = vunpack.c.l.b16 %v411
        %v493 = vunpack.c.l.b16 %v412
        %v494 = vunpack.c.l.b16 %v413
        %v495 = vunpack.c.l.b16 %v414
        %v496 = vunpack.c.l.b16 %v415
        %v497 = vunpack.c.l.b16 %v416
        %v498 = vunpack.c.l.b16 %v417
        %v499 = vunpack.c.l.b16 %v418
        %v500 = vunpack.c.l.b16 %v419
        %v501 = vunpack.c.l.b16 %v420
        %v502 = vunpack.c.l.b16 %v421
        %v503 = vunpack.c.l.b16 %v422
        %v504 = vunpack.c.l.b16 %v423
        %v505 = vpack.c.b16 %v490, %v489
        %v506 = vpack.c.b16 %v492, %v491
        %v507 = vpack.c.b16 %v494, %v493
        %v508 = vpack.c.b16 %v496, %v495
        %v509 = vpack.c.b16 %v498, %v497
        %v510 = vpack.c.b16 %v500, %v499
        %v511 = vpack.c.b16 %v502, %v501
        %v512 = vpack.c.b16 %v504, %v503
        %v522 = vrot.slane %v467, 1
        %524 = vmatprep.subr.bf16.mxu0 0
        %525 = vmatpush1.bf16.msra.mxu0 %v505
        %526 = vmatprep.subr.bf16.mxu0 0
        %527 = vmatpush1.bf16.msra.mxu0 %v506
        %528 = vmatprep.subr.bf16.mxu0 0
        %529 = vmatpush1.bf16.msra.mxu0 %v507
        %530 = vmatprep.subr.bf16.mxu0 0
        %531 = vmatpush1.bf16.msra.mxu0 %v508
        %532 = vmatprep.subr.bf16.mxu0 0
        %533 = vmatpush1.bf16.msra.mxu0 %v509
        %534 = vmatprep.subr.bf16.mxu0 0
        %535 = vmatpush1.bf16.msra.mxu0 %v510
        %536 = vmatprep.subr.bf16.mxu0 0
        %537 = vmatpush1.bf16.msra.mxu0 %v511
        %538 = vmatprep.subr.bf16.mxu0 0
        %539 = vmatpush1.bf16.msra.mxu0 %v512
        %540 = vmatprep.subr.bf16.mxu0 0
        %541 = vmatpush1.bf16.msra.mxu0 0
        %542 = vmatprep.subr.bf16.mxu0 0
        %543 = vmatpush1.bf16.msra.mxu0 0
        %544 = vmatprep.subr.bf16.mxu0 0
        %545 = vmatpush1.bf16.msra.mxu0 0
        %546 = vmatprep.subr.bf16.mxu0 0
        %547 = vmatpush1.bf16.msra.mxu0 0
        %548 = vmatprep.subr.bf16.mxu0 0
        %549 = vmatpush1.bf16.msra.mxu0 0
        %550 = vmatprep.subr.bf16.mxu0 0
        %551 = vmatpush1.bf16.msra.mxu0 0
        %552 = vmatprep.subr.bf16.mxu0 0
        %553 = vmatpush1.bf16.msra.mxu0 0
        %554 = vmatprep.subr.bf16.mxu0 0
        %555 = vmatpush1.bf16.msra.mxu0 0
        %556 = vmatprep.mubr.bf16.mxu0 0
        %557 = vmatmul.mubr.bf16.gmra.mrb[0].mxu0 %v472
        %v558 = vpop.f32.mrb[0].mxu0
        %v559 = vadd.f32 %v522, %v558
        %v560 = vpop.f32.mrb[0].mxu0
        %v561 = vpop.f32.mrb[0].mxu0
        %v562 = vpop.f32.mrb[0].mxu0
        %563 = vdwg.mxu0
        %v564 = vstv %s403
        %v565 = vadd.f32 %v559, %v564
        %s566 = sld [smem:[#allocation9 + %s402]]
        %v567 = vstv %s404
        %v568 = vmul.f32 %v565, %v567
        %v569 = vadd.f32 %v568, %v405
        %v570 = vstv %s566
        %v571 = vadd.f32 %v569, %v570
        %vm572 = vcmask 1040384
        %v573 = vsel %vm572, %v571, -inf
        %574 = vmax.xlane.f32.xlu0 %v573
        %v575 = vpop.xlane.xlu0 %574
        %v576 = vsub.f32 %v571, %v575
        %v577 = vmul.f32 %v576, 1.442695
        %v578 = vpow.pop %v577
        %v579 = vsel %vm572, %v578, 0.0
        %580 = vadd.xlane.f32.xlu0 %v579
        %v581 = vpop.xlane.xlu0 %580
        %v582 = vlog2.pop %v581
        %v583 = vmul.f32 %v582, 0.6931472
        %v584 = vadd.f32 %v583, %v575
        %v585 = vsub.f32 %v571, %v584
        %v586 = vld [vmem:[%s349] sm:$0x1]
        %vm587 = vcmp.gt.f32.partialorder %v586, 0.0
        %v588 = vsel %vm587, -1e+08, %v585
        %589 = vst [vmem:[%s398] sm:$0x1] %v588
        %s590 = scalar_lea.vmem %s340, 4 [#allocation6]
        %v591 = vld [vmem:[%s590] sm:$0xf]
        %s592 = scalar_lea.vmem %s331, 64 [#allocation2]
        %v593 = vld [vmem:[%s592] sm:$0xf]
        %v594 = vld [vmem:[%s592 + $0x4] sm:$0xf]
        %v595 = vld [vmem:[%s592 + $0x8] sm:$0xf]
        %v596 = vld [vmem:[%s592 + $0xc] sm:$0xf]
        %v597 = vld [vmem:[%s592 + $0x10] sm:$0xf]
        %v598 = vld [vmem:[%s592 + $0x14] sm:$0xf]
        %v599 = vld [vmem:[%s592 + $0x18] sm:$0xf]
        %v600 = vld [vmem:[%s592 + $0x1c] sm:$0xf]
        %v601 = vld [vmem:[%s592 + $0x20] sm:$0xf]
        %v602 = vld [vmem:[%s592 + $0x24] sm:$0xf]
        %v603 = vld [vmem:[%s592 + $0x28] sm:$0xf]
        %v604 = vld [vmem:[%s592 + $0x2c] sm:$0xf]
        %v605 = vld [vmem:[%s592 + $0x30] sm:$0xf]
        %v606 = vld [vmem:[%s592 + $0x34] sm:$0xf]
        %v607 = vld [vmem:[%s592 + $0x38] sm:$0xf]
        %v608 = vld [vmem:[%s592 + $0x3c] sm:$0xf]
        %v610 = vsel %vm428, %v591, 0
        %612 = vmatprep.subr.bf16.mxu0 0
        %613 = vmatpush1.bf16.msra.mxu0 %v610
        %614 = vmatprep.subr.bf16.mxu0 0
        %615 = vmatpush1.bf16.msra.mxu0 0
        %616 = vmatprep.subr.bf16.mxu0 0
        %617 = vmatpush1.bf16.msra.mxu0 0
        %618 = vmatprep.subr.bf16.mxu0 0
        %619 = vmatpush1.bf16.msra.mxu0 0
        %620 = vmatprep.subr.bf16.mxu0 0
        %621 = vmatpush1.bf16.msra.mxu0 0
        %622 = vmatprep.subr.bf16.mxu0 0
        %623 = vmatpush1.bf16.msra.mxu0 0
        %624 = vmatprep.subr.bf16.mxu0 0
        %625 = vmatpush1.bf16.msra.mxu0 0
        %626 = vmatprep.subr.bf16.mxu0 0
        %627 = vmatpush1.bf16.msra.mxu0 0
        %628 = vmatprep.subr.bf16.mxu0 0
        %629 = vmatpush1.bf16.msra.mxu0 0
        %630 = vmatprep.subr.bf16.mxu0 0
        %631 = vmatpush1.bf16.msra.mxu0 0
        %632 = vmatprep.subr.bf16.mxu0 0
        %633 = vmatpush1.bf16.msra.mxu0 0
        %634 = vmatprep.subr.bf16.mxu0 0
        %635 = vmatpush1.bf16.msra.mxu0 0
        %636 = vmatprep.subr.bf16.mxu0 0
        %637 = vmatpush1.bf16.msra.mxu0 0
        %638 = vmatprep.subr.bf16.mxu0 0
        %639 = vmatpush1.bf16.msra.mxu0 0
        %640 = vmatprep.subr.bf16.mxu0 0
        %641 = vmatpush1.bf16.msra.mxu0 0
        %642 = vmatprep.subr.bf16.mxu0 0
        %643 = vmatpush1.bf16.msra.mxu0 0
        %644 = vmatprep.mubr.bf16.mxu0 0
        %645 = vmatmul.mubr.bf16.gmra.mrb[0].mxu0 %v426
        %v646 = vpop.f32.mrb[0].mxu0
        %v647 = vadd.f32 0.0, %v646
        %v648 = vpop.f32.mrb[0].mxu0
        %v649 = vpop.f32.mrb[0].mxu0
        %v650 = vpop.f32.mrb[0].mxu0
        %651 = vdwg.mxu0
        %v652 = vpack.c.bf16 %v647, %v647
        %v669 = vunpack.c.l.b16 %v593
        %v670 = vunpack.c.l.b16 %v594
        %v671 = vunpack.c.l.b16 %v595
        %v672 = vunpack.c.l.b16 %v596
        %v673 = vunpack.c.l.b16 %v597
        %v674 = vunpack.c.l.b16 %v598
        %v675 = vunpack.c.l.b16 %v599
        %v676 = vunpack.c.l.b16 %v600
        %v677 = vunpack.c.l.b16 %v601
        %v678 = vunpack.c.l.b16 %v602
        %v679 = vunpack.c.l.b16 %v603
        %v680 = vunpack.c.l.b16 %v604
        %v681 = vunpack.c.l.b16 %v605
        %v682 = vunpack.c.l.b16 %v606
        %v683 = vunpack.c.l.b16 %v607
        %v684 = vunpack.c.l.b16 %v608
        %v685 = vpack.c.b16 %v670, %v669
        %v686 = vpack.c.b16 %v672, %v671
        %v687 = vpack.c.b16 %v674, %v673
        %v688 = vpack.c.b16 %v676, %v675
        %v689 = vpack.c.b16 %v678, %v677
        %v690 = vpack.c.b16 %v680, %v679
        %v691 = vpack.c.b16 %v682, %v681
        %v692 = vpack.c.b16 %v684, %v683
        %v702 = vrot.slane %v647, 1
        %704 = vmatprep.subr.bf16.mxu0 0
        %705 = vmatpush1.bf16.msra.mxu0 %v685
        %706 = vmatprep.subr.bf16.mxu0 0
        %707 = vmatpush1.bf16.msra.mxu0 %v686
        %708 = vmatprep.subr.bf16.mxu0 0
        %709 = vmatpush1.bf16.msra.mxu0 %v687
        %710 = vmatprep.subr.bf16.mxu0 0
        %711 = vmatpush1.bf16.msra.mxu0 %v688
        %712 = vmatprep.subr.bf16.mxu0 0
        %713 = vmatpush1.bf16.msra.mxu0 %v689
        %714 = vmatprep.subr.bf16.mxu0 0
        %715 = vmatpush1.bf16.msra.mxu0 %v690
        %716 = vmatprep.subr.bf16.mxu0 0
        %717 = vmatpush1.bf16.msra.mxu0 %v691
        %718 = vmatprep.subr.bf16.mxu0 0
        %719 = vmatpush1.bf16.msra.mxu0 %v692
        %720 = vmatprep.subr.bf16.mxu0 0
        %721 = vmatpush1.bf16.msra.mxu0 0
        %722 = vmatprep.subr.bf16.mxu0 0
        %723 = vmatpush1.bf16.msra.mxu0 0
        %724 = vmatprep.subr.bf16.mxu0 0
        %725 = vmatpush1.bf16.msra.mxu0 0
        %726 = vmatprep.subr.bf16.mxu0 0
        %727 = vmatpush1.bf16.msra.mxu0 0
        %728 = vmatprep.subr.bf16.mxu0 0
        %729 = vmatpush1.bf16.msra.mxu0 0
        %730 = vmatprep.subr.bf16.mxu0 0
        %731 = vmatpush1.bf16.msra.mxu0 0
        %732 = vmatprep.subr.bf16.mxu0 0
        %733 = vmatpush1.bf16.msra.mxu0 0
        %734 = vmatprep.subr.bf16.mxu0 0
        %735 = vmatpush1.bf16.msra.mxu0 0
        %736 = vmatprep.mubr.bf16.mxu0 0
        %737 = vmatmul.mubr.bf16.gmra.mrb[0].mxu0 %v652
        %v738 = vpop.f32.mrb[0].mxu0
        %v739 = vadd.f32 %v702, %v738
        %v740 = vpop.f32.mrb[0].mxu0
        %v741 = vpop.f32.mrb[0].mxu0
        %v742 = vpop.f32.mrb[0].mxu0
        %743 = vdwg.mxu0
        %v744 = vadd.f32 %v739, %v564
        %s745 = sadd.s32 %s402, 1
        %s746 = sld [smem:[#allocation9 + %s745]]
        %v747 = vmul.f32 %v744, %v567
        %v748 = vadd.f32 %v747, %v405
        %v749 = vstv %s746
        %v750 = vadd.f32 %v748, %v749
        %v751 = vsel %vm572, %v750, -inf
        %752 = vmax.xlane.f32.xlu0 %v751
        %v753 = vpop.xlane.xlu0 %752
        %v754 = vsub.f32 %v750, %v753
        %v755 = vmul.f32 %v754, 1.442695
        %v756 = vpow.pop %v755
        %v757 = vsel %vm572, %v756, 0.0
        %758 = vadd.xlane.f32.xlu0 %v757
        %v759 = vpop.xlane.xlu0 %758
        %v760 = vlog2.pop %v759
        %v761 = vmul.f32 %v760, 0.6931472
        %v762 = vadd.f32 %v761, %v753
        %v763 = vsub.f32 %v750, %v762
        %v764 = vld [vmem:[%s349 + $0x1] sm:$0x1]
        %vm765 = vcmp.gt.f32.partialorder %v764, 0.0
        %v766 = vsel %vm765, -1e+08, %v763
        %767 = vst [vmem:[%s398 + $0x1] sm:$0x1] %v766
        %s768 = scalar_lea.vmem %s340, 8 [#allocation6]
        %v769 = vld [vmem:[%s768] sm:$0xf]
        %s770 = scalar_lea.vmem %s331, 128 [#allocation2]
        %v771 = vld [vmem:[%s770] sm:$0xf]
        %v772 = vld [vmem:[%s770 + $0x4] sm:$0xf]
        %v773 = vld [vmem:[%s770 + $0x8] sm:$0xf]
        %v774 = vld [vmem:[%s770 + $0xc] sm:$0xf]
        %v775 = vld [vmem:[%s770 + $0x10] sm:$0xf]
        %v776 = vld [vmem:[%s770 + $0x14] sm:$0xf]
        %v777 = vld [vmem:[%s770 + $0x18] sm:$0xf]
        %v778 = vld [vmem:[%s770 + $0x1c] sm:$0xf]
        %v779 = vld [vmem:[%s770 + $0x20] sm:$0xf]
        %v780 = vld [vmem:[%s770 + $0x24] sm:$0xf]
        %v781 = vld [vmem:[%s770 + $0x28] sm:$0xf]
        %v782 = vld [vmem:[%s770 + $0x2c] sm:$0xf]
        %v783 = vld [vmem:[%s770 + $0x30] sm:$0xf]
        %v784 = vld [vmem:[%s770 + $0x34] sm:$0xf]
        %v785 = vld [vmem:[%s770 + $0x38] sm:$0xf]
        %v786 = vld [vmem:[%s770 + $0x3c] sm:$0xf]
        %v788 = vsel %vm428, %v769, 0
        %790 = vmatprep.subr.bf16.mxu0 0
        %791 = vmatpush1.bf16.msra.mxu0 %v788
        %792 = vmatprep.subr.bf16.mxu0 0
        %793 = vmatpush1.bf16.msra.mxu0 0
        %794 = vmatprep.subr.bf16.mxu0 0
        %795 = vmatpush1.bf16.msra.mxu0 0
        %796 = vmatprep.subr.bf16.mxu0 0
        %797 = vmatpush1.bf16.msra.mxu0 0
        %798 = vmatprep.subr.bf16.mxu0 0
        %799 = vmatpush1.bf16.msra.mxu0 0
        %800 = vmatprep.subr.bf16.mxu0 0
        %801 = vmatpush1.bf16.msra.mxu0 0
        %802 = vmatprep.subr.bf16.mxu0 0
        %803 = vmatpush1.bf16.msra.mxu0 0
        %804 = vmatprep.subr.bf16.mxu0 0
        %805 = vmatpush1.bf16.msra.mxu0 0
        %806 = vmatprep.subr.bf16.mxu0 0
        %807 = vmatpush1.bf16.msra.mxu0 0
        %808 = vmatprep.subr.bf16.mxu0 0
        %809 = vmatpush1.bf16.msra.mxu0 0
        %810 = vmatprep.subr.bf16.mxu0 0
        %811 = vmatpush1.bf16.msra.mxu0 0
        %812 = vmatprep.subr.bf16.mxu0 0
        %813 = vmatpush1.bf16.msra.mxu0 0
        %814 = vmatprep.subr.bf16.mxu0 0
        %815 = vmatpush1.bf16.msra.mxu0 0
        %816 = vmatprep.subr.bf16.mxu0 0
        %817 = vmatpush1.bf16.msra.mxu0 0
        %818 = vmatprep.subr.bf16.mxu0 0
        %819 = vmatpush1.bf16.msra.mxu0 0
        %820 = vmatprep.subr.bf16.mxu0 0
        %821 = vmatpush1.bf16.msra.mxu0 0
        %822 = vmatprep.mubr.bf16.mxu0 0
        %823 = vmatmul.mubr.bf16.gmra.mrb[0].mxu0 %v426
        %v824 = vpop.f32.mrb[0].mxu0
        %v825 = vadd.f32 0.0, %v824
        %v826 = vpop.f32.mrb[0].mxu0
        %v827 = vpop.f32.mrb[0].mxu0
        %v828 = vpop.f32.mrb[0].mxu0
        %829 = vdwg.mxu0
        %v830 = vpack.c.bf16 %v825, %v825
        %v847 = vunpack.c.l.b16 %v771
        %v848 = vunpack.c.l.b16 %v772
        %v849 = vunpack.c.l.b16 %v773
        %v850 = vunpack.c.l.b16 %v774
        %v851 = vunpack.c.l.b16 %v775
        %v852 = vunpack.c.l.b16 %v776
        %v853 = vunpack.c.l.b16 %v777
        %v854 = vunpack.c.l.b16 %v778
        %v855 = vunpack.c.l.b16 %v779
        %v856 = vunpack.c.l.b16 %v780
        %v857 = vunpack.c.l.b16 %v781
        %v858 = vunpack.c.l.b16 %v782
        %v859 = vunpack.c.l.b16 %v783
        %v860 = vunpack.c.l.b16 %v784
        %v861 = vunpack.c.l.b16 %v785
        %v862 = vunpack.c.l.b16 %v786
        %v863 = vpack.c.b16 %v848, %v847
        %v864 = vpack.c.b16 %v850, %v849
        %v865 = vpack.c.b16 %v852, %v851
        %v866 = vpack.c.b16 %v854, %v853
        %v867 = vpack.c.b16 %v856, %v855
        %v868 = vpack.c.b16 %v858, %v857
        %v869 = vpack.c.b16 %v860, %v859
        %v870 = vpack.c.b16 %v862, %v861
        %v880 = vrot.slane %v825, 1
        %882 = vmatprep.subr.bf16.mxu0 0
        %883 = vmatpush1.bf16.msra.mxu0 %v863
        %884 = vmatprep.subr.bf16.mxu0 0
        %885 = vmatpush1.bf16.msra.mxu0 %v864
        %886 = vmatprep.subr.bf16.mxu0 0
        %887 = vmatpush1.bf16.msra.mxu0 %v865
        %888 = vmatprep.subr.bf16.mxu0 0
        %889 = vmatpush1.bf16.msra.mxu0 %v866
        %890 = vmatprep.subr.bf16.mxu0 0
        %891 = vmatpush1.bf16.msra.mxu0 %v867
        %892 = vmatprep.subr.bf16.mxu0 0
        %893 = vmatpush1.bf16.msra.mxu0 %v868
        %894 = vmatprep.subr.bf16.mxu0 0
        %895 = vmatpush1.bf16.msra.mxu0 %v869
        %896 = vmatprep.subr.bf16.mxu0 0
        %897 = vmatpush1.bf16.msra.mxu0 %v870
        %898 = vmatprep.subr.bf16.mxu0 0
        %899 = vmatpush1.bf16.msra.mxu0 0
        %900 = vmatprep.subr.bf16.mxu0 0
        %901 = vmatpush1.bf16.msra.mxu0 0
        %902 = vmatprep.subr.bf16.mxu0 0
        %903 = vmatpush1.bf16.msra.mxu0 0
        %904 = vmatprep.subr.bf16.mxu0 0
        %905 = vmatpush1.bf16.msra.mxu0 0
        %906 = vmatprep.subr.bf16.mxu0 0
        %907 = vmatpush1.bf16.msra.mxu0 0
        %908 = vmatprep.subr.bf16.mxu0 0
        %909 = vmatpush1.bf16.msra.mxu0 0
        %910 = vmatprep.subr.bf16.mxu0 0
        %911 = vmatpush1.bf16.msra.mxu0 0
        %912 = vmatprep.subr.bf16.mxu0 0
        %913 = vmatpush1.bf16.msra.mxu0 0
        %914 = vmatprep.mubr.bf16.mxu0 0
        %915 = vmatmul.mubr.bf16.gmra.mrb[0].mxu0 %v830
        %v916 = vpop.f32.mrb[0].mxu0
        %v917 = vadd.f32 %v880, %v916
        %v918 = vpop.f32.mrb[0].mxu0
        %v919 = vpop.f32.mrb[0].mxu0
        %v920 = vpop.f32.mrb[0].mxu0
        %921 = vdwg.mxu0
        %v922 = vadd.f32 %v917, %v564
        %s923 = sadd.s32 %s402, 2
        %s924 = sld [smem:[#allocation9 + %s923]]
        %v925 = vmul.f32 %v922, %v567
        %v926 = vadd.f32 %v925, %v405
        %v927 = vstv %s924
        %v928 = vadd.f32 %v926, %v927
        %v929 = vsel %vm572, %v928, -inf
        %930 = vmax.xlane.f32.xlu0 %v929
        %v931 = vpop.xlane.xlu0 %930
        %v932 = vsub.f32 %v928, %v931
        %v933 = vmul.f32 %v932, 1.442695
        %v934 = vpow.pop %v933
        %v935 = vsel %vm572, %v934, 0.0
        %936 = vadd.xlane.f32.xlu0 %v935
        %v937 = vpop.xlane.xlu0 %936
        %v938 = vlog2.pop %v937
        %v939 = vmul.f32 %v938, 0.6931472
        %v940 = vadd.f32 %v939, %v931
        %v941 = vsub.f32 %v928, %v940
        %v942 = vld [vmem:[%s349 + $0x2] sm:$0x1]
        %vm943 = vcmp.gt.f32.partialorder %v942, 0.0
        %v944 = vsel %vm943, -1e+08, %v941
        %945 = vst [vmem:[%s398 + $0x2] sm:$0x1] %v944
        %s946 = scalar_lea.vmem %s340, 12 [#allocation6]
        %v947 = vld [vmem:[%s946] sm:$0xf]
        %s948 = scalar_lea.vmem %s331, 192 [#allocation2]
        %v949 = vld [vmem:[%s948] sm:$0xf]
        %v950 = vld [vmem:[%s948 + $0x4] sm:$0xf]
        %v951 = vld [vmem:[%s948 + $0x8] sm:$0xf]
        %v952 = vld [vmem:[%s948 + $0xc] sm:$0xf]
        %v953 = vld [vmem:[%s948 + $0x10] sm:$0xf]
        %v954 = vld [vmem:[%s948 + $0x14] sm:$0xf]
        %v955 = vld [vmem:[%s948 + $0x18] sm:$0xf]
        %v956 = vld [vmem:[%s948 + $0x1c] sm:$0xf]
        %v957 = vld [vmem:[%s948 + $0x20] sm:$0xf]
        %v958 = vld [vmem:[%s948 + $0x24] sm:$0xf]
        %v959 = vld [vmem:[%s948 + $0x28] sm:$0xf]
        %v960 = vld [vmem:[%s948 + $0x2c] sm:$0xf]
        %v961 = vld [vmem:[%s948 + $0x30] sm:$0xf]
        %v962 = vld [vmem:[%s948 + $0x34] sm:$0xf]
        %v963 = vld [vmem:[%s948 + $0x38] sm:$0xf]
        %v964 = vld [vmem:[%s948 + $0x3c] sm:$0xf]
        %v966 = vsel %vm428, %v947, 0
        %968 = vmatprep.subr.bf16.mxu0 0
        %969 = vmatpush1.bf16.msra.mxu0 %v966
        %970 = vmatprep.subr.bf16.mxu0 0
        %971 = vmatpush1.bf16.msra.mxu0 0
        %972 = vmatprep.subr.bf16.mxu0 0
        %973 = vmatpush1.bf16.msra.mxu0 0
        %974 = vmatprep.subr.bf16.mxu0 0
        %975 = vmatpush1.bf16.msra.mxu0 0
        %976 = vmatprep.subr.bf16.mxu0 0
        %977 = vmatpush1.bf16.msra.mxu0 0
        %978 = vmatprep.subr.bf16.mxu0 0
        %979 = vmatpush1.bf16.msra.mxu0 0
        %980 = vmatprep.subr.bf16.mxu0 0
        %981 = vmatpush1.bf16.msra.mxu0 0
        %982 = vmatprep.subr.bf16.mxu0 0
        %983 = vmatpush1.bf16.msra.mxu0 0
        %984 = vmatprep.subr.bf16.mxu0 0
        %985 = vmatpush1.bf16.msra.mxu0 0
        %986 = vmatprep.subr.bf16.mxu0 0
        %987 = vmatpush1.bf16.msra.mxu0 0
        %988 = vmatprep.subr.bf16.mxu0 0
        %989 = vmatpush1.bf16.msra.mxu0 0
        %990 = vmatprep.subr.bf16.mxu0 0
        %991 = vmatpush1.bf16.msra.mxu0 0
        %992 = vmatprep.subr.bf16.mxu0 0
        %993 = vmatpush1.bf16.msra.mxu0 0
        %994 = vmatprep.subr.bf16.mxu0 0
        %995 = vmatpush1.bf16.msra.mxu0 0
        %996 = vmatprep.subr.bf16.mxu0 0
        %997 = vmatpush1.bf16.msra.mxu0 0
        %998 = vmatprep.subr.bf16.mxu0 0
        %999 = vmatpush1.bf16.msra.mxu0 0
        %1000 = vmatprep.mubr.bf16.mxu0 0
        %1001 = vmatmul.mubr.bf16.gmra.mrb[0].mxu0 %v426
        %v1002 = vpop.f32.mrb[0].mxu0
        %v1003 = vadd.f32 0.0, %v1002
        %v1004 = vpop.f32.mrb[0].mxu0
        %v1005 = vpop.f32.mrb[0].mxu0
        %v1006 = vpop.f32.mrb[0].mxu0
        %1007 = vdwg.mxu0
        %v1008 = vpack.c.bf16 %v1003, %v1003
        %v1025 = vunpack.c.l.b16 %v949
        %v1026 = vunpack.c.l.b16 %v950
        %v1027 = vunpack.c.l.b16 %v951
        %v1028 = vunpack.c.l.b16 %v952
        %v1029 = vunpack.c.l.b16 %v953
        %v1030 = vunpack.c.l.b16 %v954
        %v1031 = vunpack.c.l.b16 %v955
        %v1032 = vunpack.c.l.b16 %v956
        %v1033 = vunpack.c.l.b16 %v957
        %v1034 = vunpack.c.l.b16 %v958
        %v1035 = vunpack.c.l.b16 %v959
        %v1036 = vunpack.c.l.b16 %v960
        %v1037 = vunpack.c.l.b16 %v961
        %v1038 = vunpack.c.l.b16 %v962
        %v1039 = vunpack.c.l.b16 %v963
        %v1040 = vunpack.c.l.b16 %v964
        %v1041 = vpack.c.b16 %v1026, %v1025
        %v1042 = vpack.c.b16 %v1028, %v1027
        %v1043 = vpack.c.b16 %v1030, %v1029
        %v1044 = vpack.c.b16 %v1032, %v1031
        %v1045 = vpack.c.b16 %v1034, %v1033
        %v1046 = vpack.c.b16 %v1036, %v1035
        %v1047 = vpack.c.b16 %v1038, %v1037
        %v1048 = vpack.c.b16 %v1040, %v1039
        %v1058 = vrot.slane %v1003, 1
        %1060 = vmatprep.subr.bf16.mxu0 0
        %1061 = vmatpush1.bf16.msra.mxu0 %v1041
        %1062 = vmatprep.subr.bf16.mxu0 0
        %1063 = vmatpush1.bf16.msra.mxu0 %v1042
        %1064 = vmatprep.subr.bf16.mxu0 0
        %1065 = vmatpush1.bf16.msra.mxu0 %v1043
        %1066 = vmatprep.subr.bf16.mxu0 0
        %1067 = vmatpush1.bf16.msra.mxu0 %v1044
        %1068 = vmatprep.subr.bf16.mxu0 0
        %1069 = vmatpush1.bf16.msra.mxu0 %v1045
        %1070 = vmatprep.subr.bf16.mxu0 0
        %1071 = vmatpush1.bf16.msra.mxu0 %v1046
        %1072 = vmatprep.subr.bf16.mxu0 0
        %1073 = vmatpush1.bf16.msra.mxu0 %v1047
        %1074 = vmatprep.subr.bf16.mxu0 0
        %1075 = vmatpush1.bf16.msra.mxu0 %v1048
        %1076 = vmatprep.subr.bf16.mxu0 0
        %1077 = vmatpush1.bf16.msra.mxu0 0
        %1078 = vmatprep.subr.bf16.mxu0 0
        %1079 = vmatpush1.bf16.msra.mxu0 0
        %1080 = vmatprep.subr.bf16.mxu0 0
        %1081 = vmatpush1.bf16.msra.mxu0 0
        %1082 = vmatprep.subr.bf16.mxu0 0
        %1083 = vmatpush1.bf16.msra.mxu0 0
        %1084 = vmatprep.subr.bf16.mxu0 0
        %1085 = vmatpush1.bf16.msra.mxu0 0
        %1086 = vmatprep.subr.bf16.mxu0 0
        %1087 = vmatpush1.bf16.msra.mxu0 0
        %1088 = vmatprep.subr.bf16.mxu0 0
        %1089 = vmatpush1.bf16.msra.mxu0 0
        %1090 = vmatprep.subr.bf16.mxu0 0
        %1091 = vmatpush1.bf16.msra.mxu0 0
        %1092 = vmatprep.mubr.bf16.mxu0 0
        %1093 = vmatmul.mubr.bf16.gmra.mrb[0].mxu0 %v1008
        %v1094 = vpop.f32.mrb[0].mxu0
        %v1095 = vadd.f32 %v1058, %v1094
        %v1096 = vpop.f32.mrb[0].mxu0
        %v1097 = vpop.f32.mrb[0].mxu0
        %v1098 = vpop.f32.mrb[0].mxu0
        %1099 = vdwg.mxu0
        %v1100 = vadd.f32 %v1095, %v564
        %s1101 = sadd.s32 %s402, 3
        %s1102 = sld [smem:[#allocation9 + %s1101]]
        %v1103 = vmul.f32 %v1100, %v567
        %v1104 = vadd.f32 %v1103, %v405
        %v1105 = vstv %s1102
        %v1106 = vadd.f32 %v1104, %v1105
        %v1107 = vsel %vm572, %v1106, -inf
        %1108 = vmax.xlane.f32.xlu0 %v1107
        %v1109 = vpop.xlane.xlu0 %1108
        %v1110 = vsub.f32 %v1106, %v1109
        %v1111 = vmul.f32 %v1110, 1.442695
        %v1112 = vpow.pop %v1111
        %v1113 = vsel %vm572, %v1112, 0.0
        %1114 = vadd.xlane.f32.xlu0 %v1113
        %v1115 = vpop.xlane.xlu0 %1114
        %v1116 = vlog2.pop %v1115
        %v1117 = vmul.f32 %v1116, 0.6931472
        %v1118 = vadd.f32 %v1117, %v1109
        %v1119 = vsub.f32 %v1106, %v1118
        %v1120 = vld [vmem:[%s349 + $0x3] sm:$0x1]
        %vm1121 = vcmp.gt.f32.partialorder %v1120, 0.0
        %v1122 = vsel %vm1121, -1e+08, %v1119
        %1123 = vst [vmem:[%s398 + $0x3] sm:$0x1] %v1122
        %s1124 = scalar_lea.vmem %s340, 16 [#allocation6]
        %v1125 = vld [vmem:[%s1124] sm:$0xf]
        %s1126 = scalar_lea.vmem %s331, 256 [#allocation2]
        %v1127 = vld [vmem:[%s1126] sm:$0xf]
        %v1128 = vld [vmem:[%s1126 + $0x4] sm:$0xf]
        %v1129 = vld [vmem:[%s1126 + $0x8] sm:$0xf]
        %v1130 = vld [vmem:[%s1126 + $0xc] sm:$0xf]
        %v1131 = vld [vmem:[%s1126 + $0x10] sm:$0xf]
        %v1132 = vld [vmem:[%s1126 + $0x14] sm:$0xf]
        %v1133 = vld [vmem:[%s1126 + $0x18] sm:$0xf]
        %v1134 = vld [vmem:[%s1126 + $0x1c] sm:$0xf]
        %v1135 = vld [vmem:[%s1126 + $0x20] sm:$0xf]
        %v1136 = vld [vmem:[%s1126 + $0x24] sm:$0xf]
        %v1137 = vld [vmem:[%s1126 + $0x28] sm:$0xf]
        %v1138 = vld [vmem:[%s1126 + $0x2c] sm:$0xf]
        %v1139 = vld [vmem:[%s1126 + $0x30] sm:$0xf]
        %v1140 = vld [vmem:[%s1126 + $0x34] sm:$0xf]
        %v1141 = vld [vmem:[%s1126 + $0x38] sm:$0xf]
        %v1142 = vld [vmem:[%s1126 + $0x3c] sm:$0xf]
        %v1144 = vsel %vm428, %v1125, 0
        %1146 = vmatprep.subr.bf16.mxu0 0
        %1147 = vmatpush1.bf16.msra.mxu0 %v1144
        %1148 = vmatprep.subr.bf16.mxu0 0
        %1149 = vmatpush1.bf16.msra.mxu0 0
        %1150 = vmatprep.subr.bf16.mxu0 0
        %1151 = vmatpush1.bf16.msra.mxu0 0
        %1152 = vmatprep.subr.bf16.mxu0 0
        %1153 = vmatpush1.bf16.msra.mxu0 0
        %1154 = vmatprep.subr.bf16.mxu0 0
        %1155 = vmatpush1.bf16.msra.mxu0 0
        %1156 = vmatprep.subr.bf16.mxu0 0
        %1157 = vmatpush1.bf16.msra.mxu0 0
        %1158 = vmatprep.subr.bf16.mxu0 0
        %1159 = vmatpush1.bf16.msra.mxu0 0
        %1160 = vmatprep.subr.bf16.mxu0 0
        %1161 = vmatpush1.bf16.msra.mxu0 0
        %1162 = vmatprep.subr.bf16.mxu0 0
        %1163 = vmatpush1.bf16.msra.mxu0 0
        %1164 = vmatprep.subr.bf16.mxu0 0
        %1165 = vmatpush1.bf16.msra.mxu0 0
        %1166 = vmatprep.subr.bf16.mxu0 0
        %1167 = vmatpush1.bf16.msra.mxu0 0
        %1168 = vmatprep.subr.bf16.mxu0 0
        %1169 = vmatpush1.bf16.msra.mxu0 0
        %1170 = vmatprep.subr.bf16.mxu0 0
        %1171 = vmatpush1.bf16.msra.mxu0 0
        %1172 = vmatprep.subr.bf16.mxu0 0
        %1173 = vmatpush1.bf16.msra.mxu0 0
        %1174 = vmatprep.subr.bf16.mxu0 0
        %1175 = vmatpush1.bf16.msra.mxu0 0
        %1176 = vmatprep.subr.bf16.mxu0 0
        %1177 = vmatpush1.bf16.msra.mxu0 0
        %1178 = vmatprep.mubr.bf16.mxu0 0
        %1179 = vmatmul.mubr.bf16.gmra.mrb[0].mxu0 %v426
        %v1180 = vpop.f32.mrb[0].mxu0
        %v1181 = vadd.f32 0.0, %v1180
        %v1182 = vpop.f32.mrb[0].mxu0
        %v1183 = vpop.f32.mrb[0].mxu0
        %v1184 = vpop.f32.mrb[0].mxu0
        %1185 = vdwg.mxu0
        %v1186 = vpack.c.bf16 %v1181, %v1181
        %v1203 = vunpack.c.l.b16 %v1127
        %v1204 = vunpack.c.l.b16 %v1128
        %v1205 = vunpack.c.l.b16 %v1129
        %v1206 = vunpack.c.l.b16 %v1130
        %v1207 = vunpack.c.l.b16 %v1131
        %v1208 = vunpack.c.l.b16 %v1132
        %v1209 = vunpack.c.l.b16 %v1133
        %v1210 = vunpack.c.l.b16 %v1134
        %v1211 = vunpack.c.l.b16 %v1135
        %v1212 = vunpack.c.l.b16 %v1136
        %v1213 = vunpack.c.l.b16 %v1137
        %v1214 = vunpack.c.l.b16 %v1138
        %v1215 = vunpack.c.l.b16 %v1139
        %v1216 = vunpack.c.l.b16 %v1140
        %v1217 = vunpack.c.l.b16 %v1141
        %v1218 = vunpack.c.l.b16 %v1142
        %v1219 = vpack.c.b16 %v1204, %v1203
        %v1220 = vpack.c.b16 %v1206, %v1205
        %v1221 = vpack.c.b16 %v1208, %v1207
        %v1222 = vpack.c.b16 %v1210, %v1209
        %v1223 = vpack.c.b16 %v1212, %v1211
        %v1224 = vpack.c.b16 %v1214, %v1213
        %v1225 = vpack.c.b16 %v1216, %v1215
        %v1226 = vpack.c.b16 %v1218, %v1217
        %v1236 = vrot.slane %v1181, 1
        %1238 = vmatprep.subr.bf16.mxu0 0
        %1239 = vmatpush1.bf16.msra.mxu0 %v1219
        %1240 = vmatprep.subr.bf16.mxu0 0
        %1241 = vmatpush1.bf16.msra.mxu0 %v1220
        %1242 = vmatprep.subr.bf16.mxu0 0
        %1243 = vmatpush1.bf16.msra.mxu0 %v1221
        %1244 = vmatprep.subr.bf16.mxu0 0
        %1245 = vmatpush1.bf16.msra.mxu0 %v1222
        %1246 = vmatprep.subr.bf16.mxu0 0
        %1247 = vmatpush1.bf16.msra.mxu0 %v1223
        %1248 = vmatprep.subr.bf16.mxu0 0
        %1249 = vmatpush1.bf16.msra.mxu0 %v1224
        %1250 = vmatprep.subr.bf16.mxu0 0
        %1251 = vmatpush1.bf16.msra.mxu0 %v1225
        %1252 = vmatprep.subr.bf16.mxu0 0
        %1253 = vmatpush1.bf16.msra.mxu0 %v1226
        %1254 = vmatprep.subr.bf16.mxu0 0
        %1255 = vmatpush1.bf16.msra.mxu0 0
        %1256 = vmatprep.subr.bf16.mxu0 0
        %1257 = vmatpush1.bf16.msra.mxu0 0
        %1258 = vmatprep.subr.bf16.mxu0 0
        %1259 = vmatpush1.bf16.msra.mxu0 0
        %1260 = vmatprep.subr.bf16.mxu0 0
        %1261 = vmatpush1.bf16.msra.mxu0 0
        %1262 = vmatprep.subr.bf16.mxu0 0
        %1263 = vmatpush1.bf16.msra.mxu0 0
        %1264 = vmatprep.subr.bf16.mxu0 0
        %1265 = vmatpush1.bf16.msra.mxu0 0
        %1266 = vmatprep.subr.bf16.mxu0 0
        %1267 = vmatpush1.bf16.msra.mxu0 0
        %1268 = vmatprep.subr.bf16.mxu0 0
        %1269 = vmatpush1.bf16.msra.mxu0 0
        %1270 = vmatprep.mubr.bf16.mxu0 0
        %1271 = vmatmul.mubr.bf16.gmra.mrb[0].mxu0 %v1186
        %v1272 = vpop.f32.mrb[0].mxu0
        %v1273 = vadd.f32 %v1236, %v1272
        %v1274 = vpop.f32.mrb[0].mxu0
        %v1275 = vpop.f32.mrb[0].mxu0
        %v1276 = vpop.f32.mrb[0].mxu0
        %1277 = vdwg.mxu0
        %v1278 = vadd.f32 %v1273, %v564
        %s1279 = sadd.s32 %s402, 4
        %s1280 = sld [smem:[#allocation9 + %s1279]]
        %v1281 = vmul.f32 %v1278, %v567
        %v1282 = vadd.f32 %v1281, %v405
        %v1283 = vstv %s1280
        %v1284 = vadd.f32 %v1282, %v1283
        %v1285 = vsel %vm572, %v1284, -inf
        %1286 = vmax.xlane.f32.xlu0 %v1285
        %v1287 = vpop.xlane.xlu0 %1286
        %v1288 = vsub.f32 %v1284, %v1287
        %v1289 = vmul.f32 %v1288, 1.442695
        %v1290 = vpow.pop %v1289
        %v1291 = vsel %vm572, %v1290, 0.0
        %1292 = vadd.xlane.f32.xlu0 %v1291
        %v1293 = vpop.xlane.xlu0 %1292
        %v1294 = vlog2.pop %v1293
        %v1295 = vmul.f32 %v1294, 0.6931472
        %v1296 = vadd.f32 %v1295, %v1287
        %v1297 = vsub.f32 %v1284, %v1296
        %v1298 = vld [vmem:[%s349 + $0x4] sm:$0x1]
        %vm1299 = vcmp.gt.f32.partialorder %v1298, 0.0
        %v1300 = vsel %vm1299, -1e+08, %v1297
        %1301 = vst [vmem:[%s398 + $0x4] sm:$0x1] %v1300
        %s1302 = scalar_lea.vmem %s340, 20 [#allocation6]
        %v1303 = vld [vmem:[%s1302] sm:$0xf]
        %s1304 = scalar_lea.vmem %s331, 320 [#allocation2]
        %v1305 = vld [vmem:[%s1304] sm:$0xf]
        %v1306 = vld [vmem:[%s1304 + $0x4] sm:$0xf]
        %v1307 = vld [vmem:[%s1304 + $0x8] sm:$0xf]
        %v1308 = vld [vmem:[%s1304 + $0xc] sm:$0xf]
        %v1309 = vld [vmem:[%s1304 + $0x10] sm:$0xf]
        %v1310 = vld [vmem:[%s1304 + $0x14] sm:$0xf]
        %v1311 = vld [vmem:[%s1304 + $0x18] sm:$0xf]
        %v1312 = vld [vmem:[%s1304 + $0x1c] sm:$0xf]
        %v1313 = vld [vmem:[%s1304 + $0x20] sm:$0xf]
        %v1314 = vld [vmem:[%s1304 + $0x24] sm:$0xf]
        %v1315 = vld [vmem:[%s1304 + $0x28] sm:$0xf]
        %v1316 = vld [vmem:[%s1304 + $0x2c] sm:$0xf]
        %v1317 = vld [vmem:[%s1304 + $0x30] sm:$0xf]
        %v1318 = vld [vmem:[%s1304 + $0x34] sm:$0xf]
        %v1319 = vld [vmem:[%s1304 + $0x38] sm:$0xf]
        %v1320 = vld [vmem:[%s1304 + $0x3c] sm:$0xf]
        %v1322 = vsel %vm428, %v1303, 0
        %1324 = vmatprep.subr.bf16.mxu0 0
        %1325 = vmatpush1.bf16.msra.mxu0 %v1322
        %1326 = vmatprep.subr.bf16.mxu0 0
        %1327 = vmatpush1.bf16.msra.mxu0 0
        %1328 = vmatprep.subr.bf16.mxu0 0
        %1329 = vmatpush1.bf16.msra.mxu0 0
        %1330 = vmatprep.subr.bf16.mxu0 0
        %1331 = vmatpush1.bf16.msra.mxu0 0
        %1332 = vmatprep.subr.bf16.mxu0 0
        %1333 = vmatpush1.bf16.msra.mxu0 0
        %1334 = vmatprep.subr.bf16.mxu0 0
        %1335 = vmatpush1.bf16.msra.mxu0 0
        %1336 = vmatprep.subr.bf16.mxu0 0
        %1337 = vmatpush1.bf16.msra.mxu0 0
        %1338 = vmatprep.subr.bf16.mxu0 0
        %1339 = vmatpush1.bf16.msra.mxu0 0
        %1340 = vmatprep.subr.bf16.mxu0 0
        %1341 = vmatpush1.bf16.msra.mxu0 0
        %1342 = vmatprep.subr.bf16.mxu0 0
        %1343 = vmatpush1.bf16.msra.mxu0 0
        %1344 = vmatprep.subr.bf16.mxu0 0
        %1345 = vmatpush1.bf16.msra.mxu0 0
        %1346 = vmatprep.subr.bf16.mxu0 0
        %1347 = vmatpush1.bf16.msra.mxu0 0
        %1348 = vmatprep.subr.bf16.mxu0 0
        %1349 = vmatpush1.bf16.msra.mxu0 0
        %1350 = vmatprep.subr.bf16.mxu0 0
        %1351 = vmatpush1.bf16.msra.mxu0 0
        %1352 = vmatprep.subr.bf16.mxu0 0
        %1353 = vmatpush1.bf16.msra.mxu0 0
        %1354 = vmatprep.subr.bf16.mxu0 0
        %1355 = vmatpush1.bf16.msra.mxu0 0
        %1356 = vmatprep.mubr.bf16.mxu0 0
        %1357 = vmatmul.mubr.bf16.gmra.mrb[0].mxu0 %v426
        %v1358 = vpop.f32.mrb[0].mxu0
        %v1359 = vadd.f32 0.0, %v1358
        %v1360 = vpop.f32.mrb[0].mxu0
        %v1361 = vpop.f32.mrb[0].mxu0
        %v1362 = vpop.f32.mrb[0].mxu0
        %1363 = vdwg.mxu0
        %v1364 = vpack.c.bf16 %v1359, %v1359
        %v1381 = vunpack.c.l.b16 %v1305
        %v1382 = vunpack.c.l.b16 %v1306
        %v1383 = vunpack.c.l.b16 %v1307
        %v1384 = vunpack.c.l.b16 %v1308
        %v1385 = vunpack.c.l.b16 %v1309
        %v1386 = vunpack.c.l.b16 %v1310
        %v1387 = vunpack.c.l.b16 %v1311
        %v1388 = vunpack.c.l.b16 %v1312
        %v1389 = vunpack.c.l.b16 %v1313
        %v1390 = vunpack.c.l.b16 %v1314
        %v1391 = vunpack.c.l.b16 %v1315
        %v1392 = vunpack.c.l.b16 %v1316
        %v1393 = vunpack.c.l.b16 %v1317
        %v1394 = vunpack.c.l.b16 %v1318
        %v1395 = vunpack.c.l.b16 %v1319
        %v1396 = vunpack.c.l.b16 %v1320
        %v1397 = vpack.c.b16 %v1382, %v1381
        %v1398 = vpack.c.b16 %v1384, %v1383
        %v1399 = vpack.c.b16 %v1386, %v1385
        %v1400 = vpack.c.b16 %v1388, %v1387
        %v1401 = vpack.c.b16 %v1390, %v1389
        %v1402 = vpack.c.b16 %v1392, %v1391
        %v1403 = vpack.c.b16 %v1394, %v1393
        %v1404 = vpack.c.b16 %v1396, %v1395
        %v1414 = vrot.slane %v1359, 1
        %1416 = vmatprep.subr.bf16.mxu0 0
        %1417 = vmatpush1.bf16.msra.mxu0 %v1397
        %1418 = vmatprep.subr.bf16.mxu0 0
        %1419 = vmatpush1.bf16.msra.mxu0 %v1398
        %1420 = vmatprep.subr.bf16.mxu0 0
        %1421 = vmatpush1.bf16.msra.mxu0 %v1399
        %1422 = vmatprep.subr.bf16.mxu0 0
        %1423 = vmatpush1.bf16.msra.mxu0 %v1400
        %1424 = vmatprep.subr.bf16.mxu0 0
        %1425 = vmatpush1.bf16.msra.mxu0 %v1401
        %1426 = vmatprep.subr.bf16.mxu0 0
        %1427 = vmatpush1.bf16.msra.mxu0 %v1402
        %1428 = vmatprep.subr.bf16.mxu0 0
        %1429 = vmatpush1.bf16.msra.mxu0 %v1403
        %1430 = vmatprep.subr.bf16.mxu0 0
        %1431 = vmatpush1.bf16.msra.mxu0 %v1404
        %1432 = vmatprep.subr.bf16.mxu0 0
        %1433 = vmatpush1.bf16.msra.mxu0 0
        %1434 = vmatprep.subr.bf16.mxu0 0
        %1435 = vmatpush1.bf16.msra.mxu0 0
        %1436 = vmatprep.subr.bf16.mxu0 0
        %1437 = vmatpush1.bf16.msra.mxu0 0
        %1438 = vmatprep.subr.bf16.mxu0 0
        %1439 = vmatpush1.bf16.msra.mxu0 0
        %1440 = vmatprep.subr.bf16.mxu0 0
        %1441 = vmatpush1.bf16.msra.mxu0 0
        %1442 = vmatprep.subr.bf16.mxu0 0
        %1443 = vmatpush1.bf16.msra.mxu0 0
        %1444 = vmatprep.subr.bf16.mxu0 0
        %1445 = vmatpush1.bf16.msra.mxu0 0
        %1446 = vmatprep.subr.bf16.mxu0 0
        %1447 = vmatpush1.bf16.msra.mxu0 0
        %1448 = vmatprep.mubr.bf16.mxu0 0
        %1449 = vmatmul.mubr.bf16.gmra.mrb[0].mxu0 %v1364
        %v1450 = vpop.f32.mrb[0].mxu0
        %v1451 = vadd.f32 %v1414, %v1450
        %v1452 = vpop.f32.mrb[0].mxu0
        %v1453 = vpop.f32.mrb[0].mxu0
        %v1454 = vpop.f32.mrb[0].mxu0
        %1455 = vdwg.mxu0
        %v1456 = vadd.f32 %v1451, %v564
        %s1457 = sadd.s32 %s402, 5
        %s1458 = sld [smem:[#allocation9 + %s1457]]
        %v1459 = vmul.f32 %v1456, %v567
        %v1460 = vadd.f32 %v1459, %v405
        %v1461 = vstv %s1458
        %v1462 = vadd.f32 %v1460, %v1461
        %v1463 = vsel %vm572, %v1462, -inf
        %1464 = vmax.xlane.f32.xlu0 %v1463
        %v1465 = vpop.xlane.xlu0 %1464
        %v1466 = vsub.f32 %v1462, %v1465
        %v1467 = vmul.f32 %v1466, 1.442695
        %v1468 = vpow.pop %v1467
        %v1469 = vsel %vm572, %v1468, 0.0
        %1470 = vadd.xlane.f32.xlu0 %v1469
        %v1471 = vpop.xlane.xlu0 %1470
        %v1472 = vlog2.pop %v1471
        %v1473 = vmul.f32 %v1472, 0.6931472
        %v1474 = vadd.f32 %v1473, %v1465
        %v1475 = vsub.f32 %v1462, %v1474
        %v1476 = vld [vmem:[%s349 + $0x5] sm:$0x1]
        %vm1477 = vcmp.gt.f32.partialorder %v1476, 0.0
        %v1478 = vsel %vm1477, -1e+08, %v1475
        %1479 = vst [vmem:[%s398 + $0x5] sm:$0x1] %v1478
        %s1480 = scalar_lea.vmem %s340, 24 [#allocation6]
        %v1481 = vld [vmem:[%s1480] sm:$0xf]
        %s1482 = scalar_lea.vmem %s331, 384 [#allocation2]
        %v1483 = vld [vmem:[%s1482] sm:$0xf]
        %v1484 = vld [vmem:[%s1482 + $0x4] sm:$0xf]
        %v1485 = vld [vmem:[%s1482 + $0x8] sm:$0xf]
        %v1486 = vld [vmem:[%s1482 + $0xc] sm:$0xf]
        %v1487 = vld [vmem:[%s1482 + $0x10] sm:$0xf]
        %v1488 = vld [vmem:[%s1482 + $0x14] sm:$0xf]
        %v1489 = vld [vmem:[%s1482 + $0x18] sm:$0xf]
        %v1490 = vld [vmem:[%s1482 + $0x1c] sm:$0xf]
        %v1491 = vld [vmem:[%s1482 + $0x20] sm:$0xf]
        %v1492 = vld [vmem:[%s1482 + $0x24] sm:$0xf]
        %v1493 = vld [vmem:[%s1482 + $0x28] sm:$0xf]
        %v1494 = vld [vmem:[%s1482 + $0x2c] sm:$0xf]
        %v1495 = vld [vmem:[%s1482 + $0x30] sm:$0xf]
        %v1496 = vld [vmem:[%s1482 + $0x34] sm:$0xf]
        %v1497 = vld [vmem:[%s1482 + $0x38] sm:$0xf]
        %v1498 = vld [vmem:[%s1482 + $0x3c] sm:$0xf]
        %v1500 = vsel %vm428, %v1481, 0
        %1502 = vmatprep.subr.bf16.mxu0 0
        %1503 = vmatpush1.bf16.msra.mxu0 %v1500
        %1504 = vmatprep.subr.bf16.mxu0 0
        %1505 = vmatpush1.bf16.msra.mxu0 0
        %1506 = vmatprep.subr.bf16.mxu0 0
        %1507 = vmatpush1.bf16.msra.mxu0 0
        %1508 = vmatprep.subr.bf16.mxu0 0
        %1509 = vmatpush1.bf16.msra.mxu0 0
        %1510 = vmatprep.subr.bf16.mxu0 0
        %1511 = vmatpush1.bf16.msra.mxu0 0
        %1512 = vmatprep.subr.bf16.mxu0 0
        %1513 = vmatpush1.bf16.msra.mxu0 0
        %1514 = vmatprep.subr.bf16.mxu0 0
        %1515 = vmatpush1.bf16.msra.mxu0 0
        %1516 = vmatprep.subr.bf16.mxu0 0
        %1517 = vmatpush1.bf16.msra.mxu0 0
        %1518 = vmatprep.subr.bf16.mxu0 0
        %1519 = vmatpush1.bf16.msra.mxu0 0
        %1520 = vmatprep.subr.bf16.mxu0 0
        %1521 = vmatpush1.bf16.msra.mxu0 0
        %1522 = vmatprep.subr.bf16.mxu0 0
        %1523 = vmatpush1.bf16.msra.mxu0 0
        %1524 = vmatprep.subr.bf16.mxu0 0
        %1525 = vmatpush1.bf16.msra.mxu0 0
        %1526 = vmatprep.subr.bf16.mxu0 0
        %1527 = vmatpush1.bf16.msra.mxu0 0
        %1528 = vmatprep.subr.bf16.mxu0 0
        %1529 = vmatpush1.bf16.msra.mxu0 0
        %1530 = vmatprep.subr.bf16.mxu0 0
        %1531 = vmatpush1.bf16.msra.mxu0 0
        %1532 = vmatprep.subr.bf16.mxu0 0
        %1533 = vmatpush1.bf16.msra.mxu0 0
        %1534 = vmatprep.mubr.bf16.mxu0 0
        %1535 = vmatmul.mubr.bf16.gmra.mrb[0].mxu0 %v426
        %v1536 = vpop.f32.mrb[0].mxu0
        %v1537 = vadd.f32 0.0, %v1536
        %v1538 = vpop.f32.mrb[0].mxu0
        %v1539 = vpop.f32.mrb[0].mxu0
        %v1540 = vpop.f32.mrb[0].mxu0
        %1541 = vdwg.mxu0
        %v1542 = vpack.c.bf16 %v1537, %v1537
        %v1559 = vunpack.c.l.b16 %v1483
        %v1560 = vunpack.c.l.b16 %v1484
        %v1561 = vunpack.c.l.b16 %v1485
        %v1562 = vunpack.c.l.b16 %v1486
        %v1563 = vunpack.c.l.b16 %v1487
        %v1564 = vunpack.c.l.b16 %v1488
        %v1565 = vunpack.c.l.b16 %v1489
        %v1566 = vunpack.c.l.b16 %v1490
        %v1567 = vunpack.c.l.b16 %v1491
        %v1568 = vunpack.c.l.b16 %v1492
        %v1569 = vunpack.c.l.b16 %v1493
        %v1570 = vunpack.c.l.b16 %v1494
        %v1571 = vunpack.c.l.b16 %v1495
        %v1572 = vunpack.c.l.b16 %v1496
        %v1573 = vunpack.c.l.b16 %v1497
        %v1574 = vunpack.c.l.b16 %v1498
        %v1575 = vpack.c.b16 %v1560, %v1559
        %v1576 = vpack.c.b16 %v1562, %v1561
        %v1577 = vpack.c.b16 %v1564, %v1563
        %v1578 = vpack.c.b16 %v1566, %v1565
        %v1579 = vpack.c.b16 %v1568, %v1567
        %v1580 = vpack.c.b16 %v1570, %v1569
        %v1581 = vpack.c.b16 %v1572, %v1571
        %v1582 = vpack.c.b16 %v1574, %v1573
        %v1592 = vrot.slane %v1537, 1
        %1594 = vmatprep.subr.bf16.mxu0 0
        %1595 = vmatpush1.bf16.msra.mxu0 %v1575
        %1596 = vmatprep.subr.bf16.mxu0 0
        %1597 = vmatpush1.bf16.msra.mxu0 %v1576
        %1598 = vmatprep.subr.bf16.mxu0 0
        %1599 = vmatpush1.bf16.msra.mxu0 %v1577
        %1600 = vmatprep.subr.bf16.mxu0 0
        %1601 = vmatpush1.bf16.msra.mxu0 %v1578
        %1602 = vmatprep.subr.bf16.mxu0 0
        %1603 = vmatpush1.bf16.msra.mxu0 %v1579
        %1604 = vmatprep.subr.bf16.mxu0 0
        %1605 = vmatpush1.bf16.msra.mxu0 %v1580
        %1606 = vmatprep.subr.bf16.mxu0 0
        %1607 = vmatpush1.bf16.msra.mxu0 %v1581
        %1608 = vmatprep.subr.bf16.mxu0 0
        %1609 = vmatpush1.bf16.msra.mxu0 %v1582
        %1610 = vmatprep.subr.bf16.mxu0 0
        %1611 = vmatpush1.bf16.msra.mxu0 0
        %1612 = vmatprep.subr.bf16.mxu0 0
        %1613 = vmatpush1.bf16.msra.mxu0 0
        %1614 = vmatprep.subr.bf16.mxu0 0
        %1615 = vmatpush1.bf16.msra.mxu0 0
        %1616 = vmatprep.subr.bf16.mxu0 0
        %1617 = vmatpush1.bf16.msra.mxu0 0
        %1618 = vmatprep.subr.bf16.mxu0 0
        %1619 = vmatpush1.bf16.msra.mxu0 0
        %1620 = vmatprep.subr.bf16.mxu0 0
        %1621 = vmatpush1.bf16.msra.mxu0 0
        %1622 = vmatprep.subr.bf16.mxu0 0
        %1623 = vmatpush1.bf16.msra.mxu0 0
        %1624 = vmatprep.subr.bf16.mxu0 0
        %1625 = vmatpush1.bf16.msra.mxu0 0
        %1626 = vmatprep.mubr.bf16.mxu0 0
        %1627 = vmatmul.mubr.bf16.gmra.mrb[0].mxu0 %v1542
        %v1628 = vpop.f32.mrb[0].mxu0
        %v1629 = vadd.f32 %v1592, %v1628
        %v1630 = vpop.f32.mrb[0].mxu0
        %v1631 = vpop.f32.mrb[0].mxu0
        %v1632 = vpop.f32.mrb[0].mxu0
        %1633 = vdwg.mxu0
        %v1634 = vadd.f32 %v1629, %v564
        %s1635 = sadd.s32 %s402, 6
        %s1636 = sld [smem:[#allocation9 + %s1635]]
        %v1637 = vmul.f32 %v1634, %v567
        %v1638 = vadd.f32 %v1637, %v405
        %v1639 = vstv %s1636
        %v1640 = vadd.f32 %v1638, %v1639
        %v1641 = vsel %vm572, %v1640, -inf
        %1642 = vmax.xlane.f32.xlu0 %v1641
        %v1643 = vpop.xlane.xlu0 %1642
        %v1644 = vsub.f32 %v1640, %v1643
        %v1645 = vmul.f32 %v1644, 1.442695
        %v1646 = vpow.pop %v1645
        %v1647 = vsel %vm572, %v1646, 0.0
        %1648 = vadd.xlane.f32.xlu0 %v1647
        %v1649 = vpop.xlane.xlu0 %1648
        %v1650 = vlog2.pop %v1649
        %v1651 = vmul.f32 %v1650, 0.6931472
        %v1652 = vadd.f32 %v1651, %v1643
        %v1653 = vsub.f32 %v1640, %v1652
        %v1654 = vld [vmem:[%s349 + $0x6] sm:$0x1]
        %vm1655 = vcmp.gt.f32.partialorder %v1654, 0.0
        %v1656 = vsel %vm1655, -1e+08, %v1653
        %1657 = vst [vmem:[%s398 + $0x6] sm:$0x1] %v1656
        %s1658 = scalar_lea.vmem %s340, 28 [#allocation6]
        %v1659 = vld [vmem:[%s1658] sm:$0xf]
        %s1660 = scalar_lea.vmem %s331, 448 [#allocation2]
        %v1661 = vld [vmem:[%s1660] sm:$0xf]
        %v1662 = vld [vmem:[%s1660 + $0x4] sm:$0xf]
        %v1663 = vld [vmem:[%s1660 + $0x8] sm:$0xf]
        %v1664 = vld [vmem:[%s1660 + $0xc] sm:$0xf]
        %v1665 = vld [vmem:[%s1660 + $0x10] sm:$0xf]
        %v1666 = vld [vmem:[%s1660 + $0x14] sm:$0xf]
        %v1667 = vld [vmem:[%s1660 + $0x18] sm:$0xf]
        %v1668 = vld [vmem:[%s1660 + $0x1c] sm:$0xf]
        %v1669 = vld [vmem:[%s1660 + $0x20] sm:$0xf]
        %v1670 = vld [vmem:[%s1660 + $0x24] sm:$0xf]
        %v1671 = vld [vmem:[%s1660 + $0x28] sm:$0xf]
        %v1672 = vld [vmem:[%s1660 + $0x2c] sm:$0xf]
        %v1673 = vld [vmem:[%s1660 + $0x30] sm:$0xf]
        %v1674 = vld [vmem:[%s1660 + $0x34] sm:$0xf]
        %v1675 = vld [vmem:[%s1660 + $0x38] sm:$0xf]
        %v1676 = vld [vmem:[%s1660 + $0x3c] sm:$0xf]
        %v1678 = vsel %vm428, %v1659, 0
        %1680 = vmatprep.subr.bf16.mxu0 0
        %1681 = vmatpush1.bf16.msra.mxu0 %v1678
        %1682 = vmatprep.subr.bf16.mxu0 0
        %1683 = vmatpush1.bf16.msra.mxu0 0
        %1684 = vmatprep.subr.bf16.mxu0 0
        %1685 = vmatpush1.bf16.msra.mxu0 0
        %1686 = vmatprep.subr.bf16.mxu0 0
        %1687 = vmatpush1.bf16.msra.mxu0 0
        %1688 = vmatprep.subr.bf16.mxu0 0
        %1689 = vmatpush1.bf16.msra.mxu0 0
        %1690 = vmatprep.subr.bf16.mxu0 0
        %1691 = vmatpush1.bf16.msra.mxu0 0
        %1692 = vmatprep.subr.bf16.mxu0 0
        %1693 = vmatpush1.bf16.msra.mxu0 0
        %1694 = vmatprep.subr.bf16.mxu0 0
        %1695 = vmatpush1.bf16.msra.mxu0 0
        %1696 = vmatprep.subr.bf16.mxu0 0
        %1697 = vmatpush1.bf16.msra.mxu0 0
        %1698 = vmatprep.subr.bf16.mxu0 0
        %1699 = vmatpush1.bf16.msra.mxu0 0
        %1700 = vmatprep.subr.bf16.mxu0 0
        %1701 = vmatpush1.bf16.msra.mxu0 0
        %1702 = vmatprep.subr.bf16.mxu0 0
        %1703 = vmatpush1.bf16.msra.mxu0 0
        %1704 = vmatprep.subr.bf16.mxu0 0
        %1705 = vmatpush1.bf16.msra.mxu0 0
        %1706 = vmatprep.subr.bf16.mxu0 0
        %1707 = vmatpush1.bf16.msra.mxu0 0
        %1708 = vmatprep.subr.bf16.mxu0 0
        %1709 = vmatpush1.bf16.msra.mxu0 0
        %1710 = vmatprep.subr.bf16.mxu0 0
        %1711 = vmatpush1.bf16.msra.mxu0 0
        %1712 = vmatprep.mubr.bf16.mxu0 0
        %1713 = vmatmul.mubr.bf16.gmra.mrb[0].mxu0 %v426
        %v1714 = vpop.f32.mrb[0].mxu0
        %v1715 = vadd.f32 0.0, %v1714
        %v1716 = vpop.f32.mrb[0].mxu0
        %v1717 = vpop.f32.mrb[0].mxu0
        %v1718 = vpop.f32.mrb[0].mxu0
        %1719 = vdwg.mxu0
        %v1720 = vpack.c.bf16 %v1715, %v1715
        %v1737 = vunpack.c.l.b16 %v1661
        %v1738 = vunpack.c.l.b16 %v1662
        %v1739 = vunpack.c.l.b16 %v1663
        %v1740 = vunpack.c.l.b16 %v1664
        %v1741 = vunpack.c.l.b16 %v1665
        %v1742 = vunpack.c.l.b16 %v1666
        %v1743 = vunpack.c.l.b16 %v1667
        %v1744 = vunpack.c.l.b16 %v1668
        %v1745 = vunpack.c.l.b16 %v1669
        %v1746 = vunpack.c.l.b16 %v1670
        %v1747 = vunpack.c.l.b16 %v1671
        %v1748 = vunpack.c.l.b16 %v1672
        %v1749 = vunpack.c.l.b16 %v1673
        %v1750 = vunpack.c.l.b16 %v1674
        %v1751 = vunpack.c.l.b16 %v1675
        %v1752 = vunpack.c.l.b16 %v1676
        %v1753 = vpack.c.b16 %v1738, %v1737
        %v1754 = vpack.c.b16 %v1740, %v1739
        %v1755 = vpack.c.b16 %v1742, %v1741
        %v1756 = vpack.c.b16 %v1744, %v1743
        %v1757 = vpack.c.b16 %v1746, %v1745
        %v1758 = vpack.c.b16 %v1748, %v1747
        %v1759 = vpack.c.b16 %v1750, %v1749
        %v1760 = vpack.c.b16 %v1752, %v1751
        %v1770 = vrot.slane %v1715, 1
        %1772 = vmatprep.subr.bf16.mxu0 0
        %1773 = vmatpush1.bf16.msra.mxu0 %v1753
        %1774 = vmatprep.subr.bf16.mxu0 0
        %1775 = vmatpush1.bf16.msra.mxu0 %v1754
        %1776 = vmatprep.subr.bf16.mxu0 0
        %1777 = vmatpush1.bf16.msra.mxu0 %v1755
        %1778 = vmatprep.subr.bf16.mxu0 0
        %1779 = vmatpush1.bf16.msra.mxu0 %v1756
        %1780 = vmatprep.subr.bf16.mxu0 0
        %1781 = vmatpush1.bf16.msra.mxu0 %v1757
        %1782 = vmatprep.subr.bf16.mxu0 0
        %1783 = vmatpush1.bf16.msra.mxu0 %v1758
        %1784 = vmatprep.subr.bf16.mxu0 0
        %1785 = vmatpush1.bf16.msra.mxu0 %v1759
        %1786 = vmatprep.subr.bf16.mxu0 0
        %1787 = vmatpush1.bf16.msra.mxu0 %v1760
        %1788 = vmatprep.subr.bf16.mxu0 0
        %1789 = vmatpush1.bf16.msra.mxu0 0
        %1790 = vmatprep.subr.bf16.mxu0 0
        %1791 = vmatpush1.bf16.msra.mxu0 0
        %1792 = vmatprep.subr.bf16.mxu0 0
        %1793 = vmatpush1.bf16.msra.mxu0 0
        %1794 = vmatprep.subr.bf16.mxu0 0
        %1795 = vmatpush1.bf16.msra.mxu0 0
        %1796 = vmatprep.subr.bf16.mxu0 0
        %1797 = vmatpush1.bf16.msra.mxu0 0
        %1798 = vmatprep.subr.bf16.mxu0 0
        %1799 = vmatpush1.bf16.msra.mxu0 0
        %1800 = vmatprep.subr.bf16.mxu0 0
        %1801 = vmatpush1.bf16.msra.mxu0 0
        %1802 = vmatprep.subr.bf16.mxu0 0
        %1803 = vmatpush1.bf16.msra.mxu0 0
        %1804 = vmatprep.mubr.bf16.mxu0 0
        %1805 = vmatmul.mubr.bf16.gmra.mrb[0].mxu0 %v1720
        %v1806 = vpop.f32.mrb[0].mxu0
        %v1807 = vadd.f32 %v1770, %v1806
        %v1808 = vpop.f32.mrb[0].mxu0
        %v1809 = vpop.f32.mrb[0].mxu0
        %v1810 = vpop.f32.mrb[0].mxu0
        %1811 = vdwg.mxu0
        %v1812 = vadd.f32 %v1807, %v564
        %s1813 = sadd.s32 %s402, 7
        %s1814 = sld [smem:[#allocation9 + %s1813]]
        %v1815 = vmul.f32 %v1812, %v567
        %v1816 = vadd.f32 %v1815, %v405
        %v1817 = vstv %s1814
        %v1818 = vadd.f32 %v1816, %v1817
        %v1819 = vsel %vm572, %v1818, -inf
        %1820 = vmax.xlane.f32.xlu0 %v1819
        %v1821 = vpop.xlane.xlu0 %1820
        %v1822 = vsub.f32 %v1818, %v1821
        %v1823 = vmul.f32 %v1822, 1.442695
        %v1824 = vpow.pop %v1823
        %v1825 = vsel %vm572, %v1824, 0.0
        %1826 = vadd.xlane.f32.xlu0 %v1825
        %v1827 = vpop.xlane.xlu0 %1826
        %v1828 = vlog2.pop %v1827
        %v1829 = vmul.f32 %v1828, 0.6931472
        %v1830 = vadd.f32 %v1829, %v1821
        %v1831 = vsub.f32 %v1818, %v1830
        %v1832 = vld [vmem:[%s349 + $0x7] sm:$0x1]
        %vm1833 = vcmp.gt.f32.partialorder %v1832, 0.0
        %v1834 = vsel %vm1833, -1e+08, %v1831
        %1835 = vst [vmem:[%s398 + $0x7] sm:$0x1] %v1834
        %s1836 = sand.u32 %s199, 1
        %s1837 = scalar_lea.sflag [#allocation4], %s1836
        %s1838 = sand.u32 %s199, 1
        %s1839 = smul.addr %s1838, 8
        %s1840 = scalar_lea.vmem [#allocation12], %s1839
        // Predicated region
        $region69: #{tpu_custom_call.1} parent=47 // pred_check
          %p1841 = pneg %p209
        $region70: #{tpu_custom_call.1} parent=47 // pred_check_branch
          %1843 = sbr.rel (%p1841) target = $region72
        $region71: #{tpu_custom_call.1} parent=47 // pred_region
          %s1845 = ssub.s32 128, 128
          %1846 = vsyncadd %s1837, %s1845
          %s1847 = smul.addr %s29, 128
          %s1848 = scalar_lea.hbm %s7, %s1847
          %s1850 = sshll.u32 %s1840, 4
          %s1851 = int_to_ptr.vmem [resolvable:$true] %s1850
          %1853 = dma.vmem_to_hbm [thread:$0]  %s1851, 128, %s1848, %s1837
        $region72: #{tpu_custom_call.1} parent=47 // pred_fallthru
          _
      $region48: #{tpu_custom_call.1} parent=5 // pred_fallthru
        _
      %p1854 = scmp.le.s32.totalorder 2, %s24
      // Predicated region
      $region73: #{tpu_custom_call.1} parent=5 // pred_check
        %p1855 = pneg %p1854
      $region74: #{tpu_custom_call.1} parent=5 // pred_check_branch
        %1857 = sbr.rel (%p1855) target = $region76
      $region75: #{tpu_custom_call.1} parent=5 // pred_region
        %s1858 = ssub.s32 %s24, 2
        // Predicated region
        $region77: #{tpu_custom_call.1} parent=75 // pred_check
          %p1859 = pneg %p215
        $region78: #{tpu_custom_call.1} parent=75 // pred_check_branch
          %1861 = sbr.rel (%p1859) target = $region80
        $region79: #{tpu_custom_call.1} parent=75 // pred_region
          %s1862 = sand.u32 %s200, 1
          %s1863 = scalar_lea.sflag [#allocation4], %s1862
          %s1864 = sand.u32 %s200, 1
          %s1865 = smul.addr %s1864, 8
          %s1866 = scalar_lea.vmem [#allocation12], %s1865
          %1867 = dma.done %s1863, 128
        $region80: #{tpu_custom_call.1} parent=75 // pred_fallthru
          _
      $region76: #{tpu_custom_call.1} parent=5 // pred_fallthru
        _
    $region6: #{tpu_custom_call.1} parent=1 // loop_footer
      %s28 = sadd.s32 1, %s24
    $region7: #{tpu_custom_call.1} parent=1 // loop_footer_branch
      %23 = sbr.rel target = $region3
    $region8: #{tpu_custom_call.1} parent=1 // loop_exit
      _
    %1868 = vsyncpa [#allocation3], 1
    %s1869 = scalar_lea.sflag [#allocation3], 1
    %1870 = vsyncpa %s1869, 1
    %1871 = vsyncpa [#allocation7], 1
    %s1872 = scalar_lea.sflag [#allocation7], 1
    %1873 = vsyncpa %s1872, 1
    %1874 = vsyncpa [#allocation4], 1
    %s1875 = scalar_lea.sflag [#allocation4], 1
    %1876 = vsyncpa %s1875, 1
    %1877 = vsyncpa [#allocation5], 1
    %s1878 = scalar_lea.sflag [#allocation5], 1
    %1879 = vsyncpa %s1878, 1
    %1880 = vsyncpa [#allocation11], 1

</llo_original>
